<compile_context>
chip_gen: v7x
topology: tpu7x:2x2x1
jax: 0.10.0
libtpu: 0.0.40
codegen_flags: <defaults>
</compile_context>

<pallas_src>
import functools

import jax
import jax.numpy as jnp
from jax.experimental import pallas as pl

LEAKY_ALPHA = 0.2
NEG_INF = -9e15


def _leaky_relu(x, alpha):
    return jnp.where(x > 0, x, alpha * x)


def _elu(x):
    # clamp the exp argument so the not-taken branch cannot overflow to inf
    return jnp.where(x > 0, x, jnp.exp(jnp.minimum(x, 0.0)) - 1.0)


def _masked_softmax(e):
    """Row softmax (dim=1); e already contains the 0/NEG_INF adjacency bias."""
    m = jnp.max(e, axis=-1, keepdims=True)
    p = jnp.exp(e - m)
    denom = jnp.sum(p, axis=-1, keepdims=True)
    return p * pl.reciprocal(denom, approx=True)      # EUP slot -> nearly free


def _attn_aggregate(attn, values):
    """(N,N) softmax weights @ (N,H) values on the MXU with bf16 inputs, f32 acc."""
    return jnp.dot(attn.astype(jnp.bfloat16), values.astype(jnp.bfloat16),
                   preferred_element_type=jnp.float32)


def _fused_aligatehr_kernel(x_ref, bias_ref, w_all_ref, wa1_ref, wa2_ref,
                            w_out_ref, wa1o_ref, wa2o_ref, o_ref,
                            *, alpha, nheads, nhid):
    x = x_ref[...]                                    # (N, F)        f32
    bias = bias_ref[...].astype(jnp.float32)          # (N, N)        0 / NEG_INF

    # ---------- multi-head layer: one projection matmul for all heads ----------
    wh_all = jnp.dot(x, w_all_ref[...],
                     preferred_element_type=jnp.float32)   # (N, nheads*nhid)
    f1_all = jnp.dot(x, wa1_ref[...],
                     preferred_element_type=jnp.float32)   # (N, nheads)
    f2_all = jnp.dot(x, wa2_ref[...],
                     preferred_element_type=jnp.float32)   # (N, nheads)
    f2t_all = f2_all.T                                      # single small transpose

    head_outs = []
    for h in range(nheads):                                 # static, unrolled
        e = _leaky_relu(f1_all[:, h:h + 1] + f2t_all[h:h + 1, :], alpha) + bias
        attn = _masked_softmax(e)                           # (N, N)
        wh_h = wh_all[:, h * nhid:(h + 1) * nhid]           # (N, nhid)
        head_outs.append(_elu(_attn_aggregate(attn, wh_h)))

    # torch.cat([h0, h1, ...], dim=1): stays lane-dense in VMEM, never hits HBM.
    x_cat = jnp.concatenate(head_outs, axis=1)              # (N, nheads*nhid)

    # ---------------------------- output layer --------------------------------
    wh_o = jnp.dot(x_cat, w_out_ref[...],
                   preferred_element_type=jnp.float32)      # (N, nclass)
    f1_o = jnp.dot(x_cat, wa1o_ref[...],
                   preferred_element_type=jnp.float32)      # (N, 1)
    f2_o = jnp.dot(x_cat, wa2o_ref[...],
                   preferred_element_type=jnp.float32)      # (N, 1)

    e_o = _leaky_relu(f1_o + f2_o.T, alpha) + bias
    attn_o = _masked_softmax(e_o)                           # (N, N)
    logits = _elu(_attn_aggregate(attn_o, wh_o))            # (N, nclass)

    # log_softmax(dim=1)
    m = jnp.max(logits, axis=-1, keepdims=True)
    lse = jnp.log(jnp.sum(jnp.exp(logits - m), axis=-1, keepdims=True)) + m
    o_ref[...] = logits - lse


def aligatehr_forward(x, adj, params, alpha=LEAKY_ALPHA):
    """Full ALIGATEHR forward (eval mode: dropout = identity), one pallas_call."""
    W = params["W"]                 # (nheads, nfeat, nhid)
    a1 = params["a1"]               # (nheads, nhid)
    a2 = params["a2"]               # (nheads, nhid)
    W_out = params["W_out"]         # (nheads*nhid, nclass)
    a1_out = params["a1_out"]       # (1, nclass)
    a2_out = params["a2_out"]       # (1, nclass)

    nheads, nfeat, nhid = W.shape
    nclass = W_out.shape[1]
    n = x.shape[0]

    # Cheap O(params) weight folding done once outside the kernel.
    w_all = jnp.transpose(W, (1, 0, 2)).reshape(nfeat, nheads * nhid)
    wa1 = jnp.einsum("hfk,hk->fh", W, a1)                   # (nfeat, nheads)
    wa2 = jnp.einsum("hfk,hk->fh", W, a2)                   # (nfeat, nheads)
    wa1_out = W_out @ a1_out.T                              # (nheads*nhid, 1)
    wa2_out = W_out @ a2_out.T                              # (nheads*nhid, 1)

    # Adjacency shipped once as a bf16 additive bias (only O(N^2) input stream).
    bias = jnp.where(adj > 0, 0.0, NEG_INF).astype(jnp.bfloat16)

    kernel = functools.partial(_fused_aligatehr_kernel,
                               alpha=alpha, nheads=nheads, nhid=nhid)
    # TODO(synk): nclass=8 output is a masked (8/128-lane) store; pad only if it
    #             ever shows up in profiles (output is O(N*nclass), negligible).
    return pl.pallas_call(
        kernel,
        out_shape=jax.ShapeDtypeStruct((n, nclass), jnp.float32),
    )(x.astype(jnp.float32), bias, w_all, wa1, wa2,
      W_out, wa1_out, wa2_out)


def init_params(key, nfeat, nhid, nclass, nheads):
    """Deterministic xavier-uniform-style init (matches nn.init.xavier_uniform_ gain=1.414)."""
    gain = 1.414
    ks = jax.random.split(key, 6)

    def xavier(k, shape, fan_in, fan_out):
        bound = gain * jnp.sqrt(6.0 / (fan_in + fan_out))
        return jax.random.uniform(k, shape, jnp.float32, -bound, bound)

    return {
        "W": xavier(ks[0], (nheads, nfeat, nhid), nfeat, nhid),
        "a1": xavier(ks[1], (nheads, nhid), 2 * nhid, 1),
        "a2": xavier(ks[2], (nheads, nhid), 2 * nhid, 1),
        "W_out": xavier(ks[3], (nheads * nhid, nclass), nheads * nhid, nclass),
        "a1_out": xavier(ks[4], (1, nclass), 2 * nclass, 1),
        "a2_out": xavier(ks[5], (1, nclass), 2 * nclass, 1),
    }


if __name__ == "__main__":
    N, NFEAT, NHID, NCLASS, NHEADS = 16, 32, 16, 8, 4

    key = jax.random.PRNGKey(0)
    k_x, k_adj, k_p = jax.random.split(key, 3)

    x = jax.random.normal(k_x, (N, NFEAT), jnp.float32)
    # random sparse-ish symmetric adjacency with self loops
    adj = (jax.random.uniform(k_adj, (N, N)) < 0.3).astype(jnp.float32)
    adj = jnp.maximum(adj, adj.T)
    adj = jnp.maximum(adj, jnp.eye(N, dtype=jnp.float32))

    params = init_params(k_p, NFEAT, NHID, NCLASS, NHEADS)

    out = aligatehr_forward(x, adj, params)
    out = jax.block_until_ready(out)

    assert out.shape == (N, NCLASS)
    # log_softmax rows must (approximately) exponentiate-sum to 1
    assert bool(jnp.allclose(jnp.sum(jnp.exp(out), axis=1), 1.0, atol=1e-4))
    print("KERNEL_OK")
</pallas_src>

<mosaic_0001>
module attributes {stable_mosaic.version = 11 : i64} {
  func.func @_fused_aligatehr_kernel(%arg0: memref<16x32xf32, #tpu.memory_space<vmem>>, %arg1: memref<16x16xbf16, #tpu.memory_space<vmem>>, %arg2: memref<32x64xf32, #tpu.memory_space<vmem>>, %arg3: memref<32x4xf32, #tpu.memory_space<vmem>>, %arg4: memref<32x4xf32, #tpu.memory_space<vmem>>, %arg5: memref<64x8xf32, #tpu.memory_space<vmem>>, %arg6: memref<64x1xf32, #tpu.memory_space<vmem>>, %arg7: memref<64x1xf32, #tpu.memory_space<vmem>>, %arg8: memref<16x8xf32, #tpu.memory_space<vmem>>) attributes {dimension_semantics = [], scalar_prefetch = 0 : i64, scratch_operands = 0 : i64, tpu.core_type = #tpu.core_type<tc>} {
    %c0 = arith.constant 0 : index
    %c0_0 = arith.constant 0 : index
    %0 = vector.load %arg0[%c0, %c0_0] : memref<16x32xf32, #tpu.memory_space<vmem>>, vector<16x32xf32>
    %c0_1 = arith.constant 0 : index
    %c0_2 = arith.constant 0 : index
    %1 = vector.load %arg1[%c0_1, %c0_2] : memref<16x16xbf16, #tpu.memory_space<vmem>>, vector<16x16xbf16>
    %2 = arith.extf %1 : vector<16x16xbf16> to vector<16x16xf32>
    %c0_3 = arith.constant 0 : index
    %c0_4 = arith.constant 0 : index
    %3 = vector.load %arg2[%c0_3, %c0_4] : memref<32x64xf32, #tpu.memory_space<vmem>>, vector<32x64xf32>
    %cst = arith.constant dense<0.000000e+00> : vector<16x64xf32>
    %4 = tpu.matmul %0, %3, %cst {dimension_numbers = #tpu.dot_dimension_numbers<[1], [0], [0], [1], [0, 0, 1, 1], [], []>} : vector<16x32xf32>, vector<32x64xf32>, vector<16x64xf32> -> vector<16x64xf32>
    %c0_5 = arith.constant 0 : index
    %c0_6 = arith.constant 0 : index
    %5 = vector.load %arg3[%c0_5, %c0_6] : memref<32x4xf32, #tpu.memory_space<vmem>>, vector<32x4xf32>
    %cst_7 = arith.constant dense<0.000000e+00> : vector<16x4xf32>
    %6 = tpu.matmul %0, %5, %cst_7 {dimension_numbers = #tpu.dot_dimension_numbers<[1], [0], [0], [1], [0, 0, 1, 1], [], []>} : vector<16x32xf32>, vector<32x4xf32>, vector<16x4xf32> -> vector<16x4xf32>
    %c0_8 = arith.constant 0 : index
    %c0_9 = arith.constant 0 : index
    %7 = vector.load %arg4[%c0_8, %c0_9] : memref<32x4xf32, #tpu.memory_space<vmem>>, vector<32x4xf32>
    %cst_10 = arith.constant dense<0.000000e+00> : vector<16x4xf32>
    %8 = tpu.matmul %0, %7, %cst_10 {dimension_numbers = #tpu.dot_dimension_numbers<[1], [0], [0], [1], [0, 0, 1, 1], [], []>} : vector<16x32xf32>, vector<32x4xf32>, vector<16x4xf32> -> vector<16x4xf32>
    %9 = tpu.transpose %8, [1, 0] : vector<16x4xf32> -> vector<4x16xf32>
    %10 = vector.extract_strided_slice %6 {offsets = [0, 0], sizes = [16, 1], strides = [1, 1]} : vector<16x4xf32> to vector<16x1xf32>
    %11 = vector.extract_strided_slice %9 {offsets = [0, 0], sizes = [1, 16], strides = [1, 1]} : vector<4x16xf32> to vector<1x16xf32>
    %12 = vector.broadcast %10 : vector<16x1xf32> to vector<16x16xf32>
    %13 = vector.broadcast %11 : vector<1x16xf32> to vector<16x16xf32>
    %14 = arith.addf %12, %13 : vector<16x16xf32>
    %cst_11 = arith.constant 0.000000e+00 : f32
    %15 = vector.broadcast %cst_11 : f32 to vector<16x16xf32>
    %16 = arith.cmpf ogt, %14, %15 : vector<16x16xf32>
    %cst_12 = arith.constant 2.000000e-01 : f32
    %17 = vector.broadcast %cst_12 : f32 to vector<16x16xf32>
    %18 = arith.mulf %17, %14 : vector<16x16xf32>
    %19 = arith.select %16, %14, %18 : vector<16x16xi1>, vector<16x16xf32>
    %20 = arith.addf %19, %2 : vector<16x16xf32>
    %cst_13 = arith.constant dense<0xFF800000> : vector<16xf32>
    %21 = vector.multi_reduction <maximumf>, %20, %cst_13 [1] : vector<16x16xf32> to vector<16xf32>
    %22 = vector.shape_cast %21 : vector<16xf32> to vector<16x1xf32>
    %23 = vector.broadcast %22 : vector<16x1xf32> to vector<16x16xf32>
    %24 = arith.subf %20, %23 : vector<16x16xf32>
    %25 = math.exp %24 : vector<16x16xf32>
    %cst_14 = arith.constant dense<0.000000e+00> : vector<16xf32>
    %26 = vector.multi_reduction <add>, %25, %cst_14 [1] : vector<16x16xf32> to vector<16xf32>
    %27 = vector.shape_cast %26 : vector<16xf32> to vector<16x1xf32>
    %28 = tpu.reciprocal %27 {approx = true} : vector<16x1xf32> -> vector<16x1xf32>
    %29 = vector.broadcast %28 : vector<16x1xf32> to vector<16x16xf32>
    %30 = arith.mulf %25, %29 : vector<16x16xf32>
    %31 = vector.extract_strided_slice %4 {offsets = [0, 0], sizes = [16, 16], strides = [1, 1]} : vector<16x64xf32> to vector<16x16xf32>
    %32 = arith.truncf %30 : vector<16x16xf32> to vector<16x16xbf16>
    %33 = arith.truncf %31 : vector<16x16xf32> to vector<16x16xbf16>
    %cst_15 = arith.constant dense<0.000000e+00> : vector<16x16xf32>
    %34 = tpu.matmul %32, %33, %cst_15 {dimension_numbers = #tpu.dot_dimension_numbers<[1], [0], [0], [1], [0, 0, 1, 1], [], []>} : vector<16x16xbf16>, vector<16x16xbf16>, vector<16x16xf32> -> vector<16x16xf32>
    %cst_16 = arith.constant 0.000000e+00 : f32
    %35 = vector.broadcast %cst_16 : f32 to vector<16x16xf32>
    %36 = arith.cmpf ogt, %34, %35 : vector<16x16xf32>
    %cst_17 = arith.constant 0.000000e+00 : f32
    %37 = vector.broadcast %cst_17 : f32 to vector<16x16xf32>
    %38 = arith.minimumf %34, %37 : vector<16x16xf32>
    %39 = math.exp %38 : vector<16x16xf32>
    %cst_18 = arith.constant 1.000000e+00 : f32
    %40 = vector.broadcast %cst_18 : f32 to vector<16x16xf32>
    %41 = arith.subf %39, %40 : vector<16x16xf32>
    %42 = arith.select %36, %34, %41 : vector<16x16xi1>, vector<16x16xf32>
    %43 = vector.extract_strided_slice %6 {offsets = [0, 1], sizes = [16, 1], strides = [1, 1]} : vector<16x4xf32> to vector<16x1xf32>
    %44 = vector.extract_strided_slice %9 {offsets = [1, 0], sizes = [1, 16], strides = [1, 1]} : vector<4x16xf32> to vector<1x16xf32>
    %45 = vector.broadcast %43 : vector<16x1xf32> to vector<16x16xf32>
    %46 = vector.broadcast %44 : vector<1x16xf32> to vector<16x16xf32>
    %47 = arith.addf %45, %46 : vector<16x16xf32>
    %cst_19 = arith.constant 0.000000e+00 : f32
    %48 = vector.broadcast %cst_19 : f32 to vector<16x16xf32>
    %49 = arith.cmpf ogt, %47, %48 : vector<16x16xf32>
    %cst_20 = arith.constant 2.000000e-01 : f32
    %50 = vector.broadcast %cst_20 : f32 to vector<16x16xf32>
    %51 = arith.mulf %50, %47 : vector<16x16xf32>
    %52 = arith.select %49, %47, %51 : vector<16x16xi1>, vector<16x16xf32>
    %53 = arith.addf %52, %2 : vector<16x16xf32>
    %cst_21 = arith.constant dense<0xFF800000> : vector<16xf32>
    %54 = vector.multi_reduction <maximumf>, %53, %cst_21 [1] : vector<16x16xf32> to vector<16xf32>
    %55 = vector.shape_cast %54 : vector<16xf32> to vector<16x1xf32>
    %56 = vector.broadcast %55 : vector<16x1xf32> to vector<16x16xf32>
    %57 = arith.subf %53, %56 : vector<16x16xf32>
    %58 = math.exp %57 : vector<16x16xf32>
    %cst_22 = arith.constant dense<0.000000e+00> : vector<16xf32>
    %59 = vector.multi_reduction <add>, %58, %cst_22 [1] : vector<16x16xf32> to vector<16xf32>
    %60 = vector.shape_cast %59 : vector<16xf32> to vector<16x1xf32>
    %61 = tpu.reciprocal %60 {approx = true} : vector<16x1xf32> -> vector<16x1xf32>
    %62 = vector.broadcast %61 : vector<16x1xf32> to vector<16x16xf32>
    %63 = arith.mulf %58, %62 : vector<16x16xf32>
    %64 = vector.extract_strided_slice %4 {offsets = [0, 16], sizes = [16, 16], strides = [1, 1]} : vector<16x64xf32> to vector<16x16xf32>
    %65 = arith.truncf %63 : vector<16x16xf32> to vector<16x16xbf16>
    %66 = arith.truncf %64 : vector<16x16xf32> to vector<16x16xbf16>
    %cst_23 = arith.constant dense<0.000000e+00> : vector<16x16xf32>
    %67 = tpu.matmul %65, %66, %cst_23 {dimension_numbers = #tpu.dot_dimension_numbers<[1], [0], [0], [1], [0, 0, 1, 1], [], []>} : vector<16x16xbf16>, vector<16x16xbf16>, vector<16x16xf32> -> vector<16x16xf32>
    %cst_24 = arith.constant 0.000000e+00 : f32
    %68 = vector.broadcast %cst_24 : f32 to vector<16x16xf32>
    %69 = arith.cmpf ogt, %67, %68 : vector<16x16xf32>
    %cst_25 = arith.constant 0.000000e+00 : f32
    %70 = vector.broadcast %cst_25 : f32 to vector<16x16xf32>
    %71 = arith.minimumf %67, %70 : vector<16x16xf32>
    %72 = math.exp %71 : vector<16x16xf32>
    %cst_26 = arith.constant 1.000000e+00 : f32
    %73 = vector.broadcast %cst_26 : f32 to vector<16x16xf32>
    %74 = arith.subf %72, %73 : vector<16x16xf32>
    %75 = arith.select %69, %67, %74 : vector<16x16xi1>, vector<16x16xf32>
    %76 = vector.extract_strided_slice %6 {offsets = [0, 2], sizes = [16, 1], strides = [1, 1]} : vector<16x4xf32> to vector<16x1xf32>
    %77 = vector.extract_strided_slice %9 {offsets = [2, 0], sizes = [1, 16], strides = [1, 1]} : vector<4x16xf32> to vector<1x16xf32>
    %78 = vector.broadcast %76 : vector<16x1xf32> to vector<16x16xf32>
    %79 = vector.broadcast %77 : vector<1x16xf32> to vector<16x16xf32>
    %80 = arith.addf %78, %79 : vector<16x16xf32>
    %cst_27 = arith.constant 0.000000e+00 : f32
    %81 = vector.broadcast %cst_27 : f32 to vector<16x16xf32>
    %82 = arith.cmpf ogt, %80, %81 : vector<16x16xf32>
    %cst_28 = arith.constant 2.000000e-01 : f32
    %83 = vector.broadcast %cst_28 : f32 to vector<16x16xf32>
    %84 = arith.mulf %83, %80 : vector<16x16xf32>
    %85 = arith.select %82, %80, %84 : vector<16x16xi1>, vector<16x16xf32>
    %86 = arith.addf %85, %2 : vector<16x16xf32>
    %cst_29 = arith.constant dense<0xFF800000> : vector<16xf32>
    %87 = vector.multi_reduction <maximumf>, %86, %cst_29 [1] : vector<16x16xf32> to vector<16xf32>
    %88 = vector.shape_cast %87 : vector<16xf32> to vector<16x1xf32>
    %89 = vector.broadcast %88 : vector<16x1xf32> to vector<16x16xf32>
    %90 = arith.subf %86, %89 : vector<16x16xf32>
    %91 = math.exp %90 : vector<16x16xf32>
    %cst_30 = arith.constant dense<0.000000e+00> : vector<16xf32>
    %92 = vector.multi_reduction <add>, %91, %cst_30 [1] : vector<16x16xf32> to vector<16xf32>
    %93 = vector.shape_cast %92 : vector<16xf32> to vector<16x1xf32>
    %94 = tpu.reciprocal %93 {approx = true} : vector<16x1xf32> -> vector<16x1xf32>
    %95 = vector.broadcast %94 : vector<16x1xf32> to vector<16x16xf32>
    %96 = arith.mulf %91, %95 : vector<16x16xf32>
    %97 = vector.extract_strided_slice %4 {offsets = [0, 32], sizes = [16, 16], strides = [1, 1]} : vector<16x64xf32> to vector<16x16xf32>
    %98 = arith.truncf %96 : vector<16x16xf32> to vector<16x16xbf16>
    %99 = arith.truncf %97 : vector<16x16xf32> to vector<16x16xbf16>
    %cst_31 = arith.constant dense<0.000000e+00> : vector<16x16xf32>
    %100 = tpu.matmul %98, %99, %cst_31 {dimension_numbers = #tpu.dot_dimension_numbers<[1], [0], [0], [1], [0, 0, 1, 1], [], []>} : vector<16x16xbf16>, vector<16x16xbf16>, vector<16x16xf32> -> vector<16x16xf32>
    %cst_32 = arith.constant 0.000000e+00 : f32
    %101 = vector.broadcast %cst_32 : f32 to vector<16x16xf32>
    %102 = arith.cmpf ogt, %100, %101 : vector<16x16xf32>
    %cst_33 = arith.constant 0.000000e+00 : f32
    %103 = vector.broadcast %cst_33 : f32 to vector<16x16xf32>
    %104 = arith.minimumf %100, %103 : vector<16x16xf32>
    %105 = math.exp %104 : vector<16x16xf32>
    %cst_34 = arith.constant 1.000000e+00 : f32
    %106 = vector.broadcast %cst_34 : f32 to vector<16x16xf32>
    %107 = arith.subf %105, %106 : vector<16x16xf32>
    %108 = arith.select %102, %100, %107 : vector<16x16xi1>, vector<16x16xf32>
    %109 = vector.extract_strided_slice %6 {offsets = [0, 3], sizes = [16, 1], strides = [1, 1]} : vector<16x4xf32> to vector<16x1xf32>
    %110 = vector.extract_strided_slice %9 {offsets = [3, 0], sizes = [1, 16], strides = [1, 1]} : vector<4x16xf32> to vector<1x16xf32>
    %111 = vector.broadcast %109 : vector<16x1xf32> to vector<16x16xf32>
    %112 = vector.broadcast %110 : vector<1x16xf32> to vector<16x16xf32>
    %113 = arith.addf %111, %112 : vector<16x16xf32>
    %cst_35 = arith.constant 0.000000e+00 : f32
    %114 = vector.broadcast %cst_35 : f32 to vector<16x16xf32>
    %115 = arith.cmpf ogt, %113, %114 : vector<16x16xf32>
    %cst_36 = arith.constant 2.000000e-01 : f32
    %116 = vector.broadcast %cst_36 : f32 to vector<16x16xf32>
    %117 = arith.mulf %116, %113 : vector<16x16xf32>
    %118 = arith.select %115, %113, %117 : vector<16x16xi1>, vector<16x16xf32>
    %119 = arith.addf %118, %2 : vector<16x16xf32>
    %cst_37 = arith.constant dense<0xFF800000> : vector<16xf32>
    %120 = vector.multi_reduction <maximumf>, %119, %cst_37 [1] : vector<16x16xf32> to vector<16xf32>
    %121 = vector.shape_cast %120 : vector<16xf32> to vector<16x1xf32>
    %122 = vector.broadcast %121 : vector<16x1xf32> to vector<16x16xf32>
    %123 = arith.subf %119, %122 : vector<16x16xf32>
    %124 = math.exp %123 : vector<16x16xf32>
    %cst_38 = arith.constant dense<0.000000e+00> : vector<16xf32>
    %125 = vector.multi_reduction <add>, %124, %cst_38 [1] : vector<16x16xf32> to vector<16xf32>
    %126 = vector.shape_cast %125 : vector<16xf32> to vector<16x1xf32>
    %127 = tpu.reciprocal %126 {approx = true} : vector<16x1xf32> -> vector<16x1xf32>
    %128 = vector.broadcast %127 : vector<16x1xf32> to vector<16x16xf32>
    %129 = arith.mulf %124, %128 : vector<16x16xf32>
    %130 = vector.extract_strided_slice %4 {offsets = [0, 48], sizes = [16, 16], strides = [1, 1]} : vector<16x64xf32> to vector<16x16xf32>
    %131 = arith.truncf %129 : vector<16x16xf32> to vector<16x16xbf16>
    %132 = arith.truncf %130 : vector<16x16xf32> to vector<16x16xbf16>
    %cst_39 = arith.constant dense<0.000000e+00> : vector<16x16xf32>
    %133 = tpu.matmul %131, %132, %cst_39 {dimension_numbers = #tpu.dot_dimension_numbers<[1], [0], [0], [1], [0, 0, 1, 1], [], []>} : vector<16x16xbf16>, vector<16x16xbf16>, vector<16x16xf32> -> vector<16x16xf32>
    %cst_40 = arith.constant 0.000000e+00 : f32
    %134 = vector.broadcast %cst_40 : f32 to vector<16x16xf32>
    %135 = arith.cmpf ogt, %133, %134 : vector<16x16xf32>
    %cst_41 = arith.constant 0.000000e+00 : f32
    %136 = vector.broadcast %cst_41 : f32 to vector<16x16xf32>
    %137 = arith.minimumf %133, %136 : vector<16x16xf32>
    %138 = math.exp %137 : vector<16x16xf32>
    %cst_42 = arith.constant 1.000000e+00 : f32
    %139 = vector.broadcast %cst_42 : f32 to vector<16x16xf32>
    %140 = arith.subf %138, %139 : vector<16x16xf32>
    %141 = arith.select %135, %133, %140 : vector<16x16xi1>, vector<16x16xf32>
    %142 = tpu.concatenate %42, %75, %108, %141 in 1 : vector<16x16xf32>, vector<16x16xf32>, vector<16x16xf32>, vector<16x16xf32> -> vector<16x64xf32>
    %c0_43 = arith.constant 0 : index
    %c0_44 = arith.constant 0 : index
    %143 = vector.load %arg5[%c0_43, %c0_44] : memref<64x8xf32, #tpu.memory_space<vmem>>, vector<64x8xf32>
    %cst_45 = arith.constant dense<0.000000e+00> : vector<16x8xf32>
    %144 = tpu.matmul %142, %143, %cst_45 {dimension_numbers = #tpu.dot_dimension_numbers<[1], [0], [0], [1], [0, 0, 1, 1], [], []>} : vector<16x64xf32>, vector<64x8xf32>, vector<16x8xf32> -> vector<16x8xf32>
    %c0_46 = arith.constant 0 : index
    %c0_47 = arith.constant 0 : index
    %145 = vector.load %arg6[%c0_46, %c0_47] : memref<64x1xf32, #tpu.memory_space<vmem>>, vector<64x1xf32>
    %cst_48 = arith.constant dense<0.000000e+00> : vector<16x1xf32>
    %146 = tpu.matmul %142, %145, %cst_48 {dimension_numbers = #tpu.dot_dimension_numbers<[1], [0], [0], [1], [0, 0, 1, 1], [], []>} : vector<16x64xf32>, vector<64x1xf32>, vector<16x1xf32> -> vector<16x1xf32>
    %c0_49 = arith.constant 0 : index
    %c0_50 = arith.constant 0 : index
    %147 = vector.load %arg7[%c0_49, %c0_50] : memref<64x1xf32, #tpu.memory_space<vmem>>, vector<64x1xf32>
    %cst_51 = arith.constant dense<0.000000e+00> : vector<16x1xf32>
    %148 = tpu.matmul %142, %147, %cst_51 {dimension_numbers = #tpu.dot_dimension_numbers<[1], [0], [0], [1], [0, 0, 1, 1], [], []>} : vector<16x64xf32>, vector<64x1xf32>, vector<16x1xf32> -> vector<16x1xf32>
    %149 = tpu.transpose %148, [1, 0] : vector<16x1xf32> -> vector<1x16xf32>
    %150 = vector.broadcast %146 : vector<16x1xf32> to vector<16x16xf32>
    %151 = vector.broadcast %149 : vector<1x16xf32> to vector<16x16xf32>
    %152 = arith.addf %150, %151 : vector<16x16xf32>
    %cst_52 = arith.constant 0.000000e+00 : f32
    %153 = vector.broadcast %cst_52 : f32 to vector<16x16xf32>
    %154 = arith.cmpf ogt, %152, %153 : vector<16x16xf32>
    %cst_53 = arith.constant 2.000000e-01 : f32
    %155 = vector.broadcast %cst_53 : f32 to vector<16x16xf32>
    %156 = arith.mulf %155, %152 : vector<16x16xf32>
    %157 = arith.select %154, %152, %156 : vector<16x16xi1>, vector<16x16xf32>
    %158 = arith.addf %157, %2 : vector<16x16xf32>
    %cst_54 = arith.constant dense<0xFF800000> : vector<16xf32>
    %159 = vector.multi_reduction <maximumf>, %158, %cst_54 [1] : vector<16x16xf32> to vector<16xf32>
    %160 = vector.shape_cast %159 : vector<16xf32> to vector<16x1xf32>
    %161 = vector.broadcast %160 : vector<16x1xf32> to vector<16x16xf32>
    %162 = arith.subf %158, %161 : vector<16x16xf32>
    %163 = math.exp %162 : vector<16x16xf32>
    %cst_55 = arith.constant dense<0.000000e+00> : vector<16xf32>
    %164 = vector.multi_reduction <add>, %163, %cst_55 [1] : vector<16x16xf32> to vector<16xf32>
    %165 = vector.shape_cast %164 : vector<16xf32> to vector<16x1xf32>
    %166 = tpu.reciprocal %165 {approx = true} : vector<16x1xf32> -> vector<16x1xf32>
    %167 = vector.broadcast %166 : vector<16x1xf32> to vector<16x16xf32>
    %168 = arith.mulf %163, %167 : vector<16x16xf32>
    %169 = arith.truncf %168 : vector<16x16xf32> to vector<16x16xbf16>
    %170 = arith.truncf %144 : vector<16x8xf32> to vector<16x8xbf16>
    %cst_56 = arith.constant dense<0.000000e+00> : vector<16x8xf32>
    %171 = tpu.matmul %169, %170, %cst_56 {dimension_numbers = #tpu.dot_dimension_numbers<[1], [0], [0], [1], [0, 0, 1, 1], [], []>} : vector<16x16xbf16>, vector<16x8xbf16>, vector<16x8xf32> -> vector<16x8xf32>
    %cst_57 = arith.constant 0.000000e+00 : f32
    %172 = vector.broadcast %cst_57 : f32 to vector<16x8xf32>
    %173 = arith.cmpf ogt, %171, %172 : vector<16x8xf32>
    %cst_58 = arith.constant 0.000000e+00 : f32
    %174 = vector.broadcast %cst_58 : f32 to vector<16x8xf32>
    %175 = arith.minimumf %171, %174 : vector<16x8xf32>
    %176 = math.exp %175 : vector<16x8xf32>
    %cst_59 = arith.constant 1.000000e+00 : f32
    %177 = vector.broadcast %cst_59 : f32 to vector<16x8xf32>
    %178 = arith.subf %176, %177 : vector<16x8xf32>
    %179 = arith.select %173, %171, %178 : vector<16x8xi1>, vector<16x8xf32>
    %cst_60 = arith.constant dense<0xFF800000> : vector<16xf32>
    %180 = vector.multi_reduction <maximumf>, %179, %cst_60 [1] : vector<16x8xf32> to vector<16xf32>
    %181 = vector.shape_cast %180 : vector<16xf32> to vector<16x1xf32>
    %182 = vector.broadcast %181 : vector<16x1xf32> to vector<16x8xf32>
    %183 = arith.subf %179, %182 : vector<16x8xf32>
    %184 = math.exp %183 : vector<16x8xf32>
    %cst_61 = arith.constant dense<0.000000e+00> : vector<16xf32>
    %185 = vector.multi_reduction <add>, %184, %cst_61 [1] : vector<16x8xf32> to vector<16xf32>
    %186 = vector.shape_cast %185 : vector<16xf32> to vector<16x1xf32>
    %187 = math.log %186 : vector<16x1xf32>
    %188 = arith.addf %187, %181 : vector<16x1xf32>
    %189 = vector.broadcast %188 : vector<16x1xf32> to vector<16x8xf32>
    %190 = arith.subf %179, %189 : vector<16x8xf32>
    %c0_62 = arith.constant 0 : index
    %c0_63 = arith.constant 0 : index
    %191 = vector.load %arg8[%c0_62, %c0_63] : memref<16x8xf32, #tpu.memory_space<vmem>>, vector<16x8xf32>
    tpu.vector_store %arg8[%c0_62, %c0_63], %190 {strides = array<i32>} : memref<16x8xf32, #tpu.memory_space<vmem>>, vector<16x8xf32>,
    return
  }
}

</mosaic_0001>

<llo_original>
// kernel: tpu_custom_call.1
$region0: #{tpu_custom_call.1}
  #allocation0 [shape = 'u32[]', space=smem, size = 0x4, offset = 0x4, fixed_abs, tag = 'smem constant byte address 0x4 - core index']
  #allocation1 [shape = 'u32[144,128]{1,0:T(1,128)}', space=vmem, size = 0x12000, scoped, tag = 'internal scratch']
  %s0 = inlined_call_operand.vmem [shape: f32[16,32], index: 0, kind: input, shape index: {}]
  %s1 = inlined_call_operand.vmem [shape: bf16[16,16], index: 1, kind: input, shape index: {}]
  %s2 = inlined_call_operand.vmem [shape: f32[32,64], index: 2, kind: input, shape index: {}]
  %s3 = inlined_call_operand.vmem [shape: f32[32,4], index: 3, kind: input, shape index: {}]
  %s4 = inlined_call_operand.vmem [shape: f32[32,4], index: 4, kind: input, shape index: {}]
  %s5 = inlined_call_operand.vmem [shape: f32[64,8], index: 5, kind: input, shape index: {}]
  %s6 = inlined_call_operand.vmem [shape: f32[64,1], index: 6, kind: input, shape index: {}]
  %s7 = inlined_call_operand.vmem [shape: f32[64,1], index: 7, kind: input, shape index: {}]
  %s8 = inlined_call_operand.vmem [shape: f32[16,8], index: 8, kind: output, shape index: {}]
  %s9 = sld [smem:[#allocation0]]
  $region42: #{tpu_custom_call.1} parent=0
    _
  %s11 = ssub.s32 1, %s9
  %s12 = scalar_select 0, %s11, %s9
  // Predicated region
  $region2: #{tpu_custom_call.1} parent=0 // pred_check
    _
  $region3: #{tpu_custom_call.1} parent=0 // pred_check_branch
    %14 = sbr.rel (0) target = $region5
  $region4: #{tpu_custom_call.1} parent=0 // pred_region
    _
  $region5: #{tpu_custom_call.1} parent=0 // pred_fallthru
    _
  // Predicated region
  $region6: #{tpu_custom_call.1} parent=0 // pred_check
    _
  $region7: #{tpu_custom_call.1} parent=0 // pred_check_branch
    %16 = sbr.rel (0) target = $region9
  $region8: #{tpu_custom_call.1} parent=0 // pred_region
    _
  $region9: #{tpu_custom_call.1} parent=0 // pred_fallthru
    _
  // Predicated region
  $region10: #{tpu_custom_call.1} parent=0 // pred_check
    _
  $region11: #{tpu_custom_call.1} parent=0 // pred_check_branch
    %18 = sbr.rel (0) target = $region13
  $region12: #{tpu_custom_call.1} parent=0 // pred_region
    _
  $region13: #{tpu_custom_call.1} parent=0 // pred_fallthru
    _
  // Predicated region
  $region14: #{tpu_custom_call.1} parent=0 // pred_check
    _
  $region15: #{tpu_custom_call.1} parent=0 // pred_check_branch
    %20 = sbr.rel (0) target = $region17
  $region16: #{tpu_custom_call.1} parent=0 // pred_region
    _
  $region17: #{tpu_custom_call.1} parent=0 // pred_fallthru
    _
  // Predicated region
  $region18: #{tpu_custom_call.1} parent=0 // pred_check
    _
  $region19: #{tpu_custom_call.1} parent=0 // pred_check_branch
    %22 = sbr.rel (0) target = $region21
  $region20: #{tpu_custom_call.1} parent=0 // pred_region
    _
  $region21: #{tpu_custom_call.1} parent=0 // pred_fallthru
    _
  // Predicated region
  $region22: #{tpu_custom_call.1} parent=0 // pred_check
    _
  $region23: #{tpu_custom_call.1} parent=0 // pred_check_branch
    %24 = sbr.rel (0) target = $region25
  $region24: #{tpu_custom_call.1} parent=0 // pred_region
    _
  $region25: #{tpu_custom_call.1} parent=0 // pred_fallthru
    _
  // Predicated region
  $region26: #{tpu_custom_call.1} parent=0 // pred_check
    _
  $region27: #{tpu_custom_call.1} parent=0 // pred_check_branch
    %26 = sbr.rel (0) target = $region29
  $region28: #{tpu_custom_call.1} parent=0 // pred_region
    _
  $region29: #{tpu_custom_call.1} parent=0 // pred_fallthru
    _
  // Predicated region
  $region30: #{tpu_custom_call.1} parent=0 // pred_check
    _
  $region31: #{tpu_custom_call.1} parent=0 // pred_check_branch
    %28 = sbr.rel (0) target = $region33
  $region32: #{tpu_custom_call.1} parent=0 // pred_region
    _
  $region33: #{tpu_custom_call.1} parent=0 // pred_fallthru
    _
  %v30 = vld [vmem:[%s0] sm:$0xff]
  %v31 = vld [vmem:[%s0 + $0x8] sm:$0xff]
  %v32 = vld [vmem:[%s1] sm:$0xf]
  %v33 = vld [vmem:[%s1 + $0x4] sm:$0xf]
  %v34 = vunpack.c.l.bf16 %v32
  %v35 = vunpack.c.l.bf16 %v33
  %v36 = vld [vmem:[%s2] sm:$0xff]
  %v37 = vld [vmem:[%s2 + $0x8] sm:$0xff]
  %v38 = vld [vmem:[%s2 + $0x10] sm:$0xff]
  %v39 = vld [vmem:[%s2 + $0x18] sm:$0xff]
  %vm40 = vcmask 261120
  %v42 = vsel %vm40, %v30, 0
  %v45 = vsel %vm40, %v31, 0
  %47 = vmatprep.subr.mxu0 0.0
  %48 = vmatpush1.msra.mxu0 %v36
  %49 = vmatprep.subr.mxu0 0.0
  %50 = vmatpush1.msra.mxu0 %v37
  %51 = vmatprep.subr.mxu0 0.0
  %52 = vmatpush1.msra.mxu0 %v38
  %53 = vmatprep.subr.mxu0 0.0
  %54 = vmatpush1.msra.mxu0 %v39
  %55 = vmatprep.subr.mxu0 0.0
  %56 = vmatpush1.msra.mxu0 0.0
  %57 = vmatprep.subr.mxu0 0.0
  %58 = vmatpush1.msra.mxu0 0.0
  %59 = vmatprep.subr.mxu0 0.0
  %60 = vmatpush1.msra.mxu0 0.0
  %61 = vmatprep.subr.mxu0 0.0
  %62 = vmatpush1.msra.mxu0 0.0
  %63 = vmatprep.subr.mxu0 0.0
  %64 = vmatpush1.msra.mxu0 0.0
  %65 = vmatprep.subr.mxu0 0.0
  %66 = vmatpush1.msra.mxu0 0.0
  %67 = vmatprep.subr.mxu0 0.0
  %68 = vmatpush1.msra.mxu0 0.0
  %69 = vmatprep.subr.mxu0 0.0
  %70 = vmatpush1.msra.mxu0 0.0
  %71 = vmatprep.subr.mxu0 0.0
  %72 = vmatpush1.msra.mxu0 0.0
  %73 = vmatprep.subr.mxu0 0.0
  %74 = vmatpush1.msra.mxu0 0.0
  %75 = vmatprep.subr.mxu0 0.0
  %76 = vmatpush1.msra.mxu0 0.0
  %77 = vmatprep.subr.mxu0 0.0
  %78 = vmatpush1.msra.mxu0 0.0
  %79 = vmatprep.subr.mxu0 0.0
  %80 = vmatpush1.msra.mxu0 0.0
  %81 = vmatprep.subr.mxu0 0.0
  %82 = vmatpush1.msra.mxu0 0.0
  %83 = vmatprep.subr.mxu0 0.0
  %84 = vmatpush1.msra.mxu0 0.0
  %85 = vmatprep.subr.mxu0 0.0
  %86 = vmatpush1.msra.mxu0 0.0
  %87 = vmatprep.subr.mxu0 0.0
  %88 = vmatpush1.msra.mxu0 0.0
  %89 = vmatprep.subr.mxu0 0.0
  %90 = vmatpush1.msra.mxu0 0.0
  %91 = vmatprep.subr.mxu0 0.0
  %92 = vmatpush1.msra.mxu0 0.0
  %93 = vmatprep.subr.mxu0 0.0
  %94 = vmatpush1.msra.mxu0 0.0
  %95 = vmatprep.subr.mxu0 0.0
  %96 = vmatpush1.msra.mxu0 0.0
  %97 = vmatprep.subr.mxu0 0.0
  %98 = vmatpush1.msra.mxu0 0.0
  %99 = vmatprep.subr.mxu0 0.0
  %100 = vmatpush1.msra.mxu0 0.0
  %101 = vmatprep.subr.mxu0 0.0
  %102 = vmatpush1.msra.mxu0 0.0
  %103 = vmatprep.subr.mxu0 0.0
  %104 = vmatpush1.msra.mxu0 0.0
  %105 = vmatprep.subr.mxu0 0.0
  %106 = vmatpush1.msra.mxu0 0.0
  %107 = vmatprep.subr.mxu0 0.0
  %108 = vmatpush1.msra.mxu0 0.0
  %109 = vmatprep.subr.mxu0 0.0
  %110 = vmatpush1.msra.mxu0 0.0
  %111 = vmatprep.mubr.f32.mxu0 0.0
  %112 = vmatmul.mubr.f32.gmra.mrb[0].mxu0 %v42
  %v113 = vpop.f32.mrb[0].mxu0
  %v114 = vadd.f32 0.0, %v113
  %v115 = vpop.f32.mrb[0].mxu0
  %116 = vmatprep.mubr.f32.mxu0 0.0
  %117 = vmatmul.mubr.f32.gmra.mrb[0].mxu0 %v45
  %v118 = vpop.f32.mrb[0].mxu0
  %v119 = vadd.f32 0.0, %v118
  %v120 = vpop.f32.mrb[0].mxu0
  %121 = vdwg.mxu0
  %v122 = vld [vmem:[%s3] sm:$0xff]
  %v123 = vld [vmem:[%s3 + $0x8] sm:$0xff]
  %v124 = vld [vmem:[%s3 + $0x10] sm:$0xff]
  %v125 = vld [vmem:[%s3 + $0x18] sm:$0xff]
  %126 = vmatprep.subr.mxu0 0.0
  %127 = vmatpush1.msra.mxu0 %v122
  %128 = vmatprep.subr.mxu0 0.0
  %129 = vmatpush1.msra.mxu0 %v123
  %130 = vmatprep.subr.mxu0 0.0
  %131 = vmatpush1.msra.mxu0 %v124
  %132 = vmatprep.subr.mxu0 0.0
  %133 = vmatpush1.msra.mxu0 %v125
  %134 = vmatprep.subr.mxu0 0.0
  %135 = vmatpush1.msra.mxu0 0.0
  %136 = vmatprep.subr.mxu0 0.0
  %137 = vmatpush1.msra.mxu0 0.0
  %138 = vmatprep.subr.mxu0 0.0
  %139 = vmatpush1.msra.mxu0 0.0
  %140 = vmatprep.subr.mxu0 0.0
  %141 = vmatpush1.msra.mxu0 0.0
  %142 = vmatprep.subr.mxu0 0.0
  %143 = vmatpush1.msra.mxu0 0.0
  %144 = vmatprep.subr.mxu0 0.0
  %145 = vmatpush1.msra.mxu0 0.0
  %146 = vmatprep.subr.mxu0 0.0
  %147 = vmatpush1.msra.mxu0 0.0
  %148 = vmatprep.subr.mxu0 0.0
  %149 = vmatpush1.msra.mxu0 0.0
  %150 = vmatprep.subr.mxu0 0.0
  %151 = vmatpush1.msra.mxu0 0.0
  %152 = vmatprep.subr.mxu0 0.0
  %153 = vmatpush1.msra.mxu0 0.0
  %154 = vmatprep.subr.mxu0 0.0
  %155 = vmatpush1.msra.mxu0 0.0
  %156 = vmatprep.subr.mxu0 0.0
  %157 = vmatpush1.msra.mxu0 0.0
  %158 = vmatprep.subr.mxu0 0.0
  %159 = vmatpush1.msra.mxu0 0.0
  %160 = vmatprep.subr.mxu0 0.0
  %161 = vmatpush1.msra.mxu0 0.0
  %162 = vmatprep.subr.mxu0 0.0
  %163 = vmatpush1.msra.mxu0 0.0
  %164 = vmatprep.subr.mxu0 0.0
  %165 = vmatpush1.msra.mxu0 0.0
  %166 = vmatprep.subr.mxu0 0.0
  %167 = vmatpush1.msra.mxu0 0.0
  %168 = vmatprep.subr.mxu0 0.0
  %169 = vmatpush1.msra.mxu0 0.0
  %170 = vmatprep.subr.mxu0 0.0
  %171 = vmatpush1.msra.mxu0 0.0
  %172 = vmatprep.subr.mxu0 0.0
  %173 = vmatpush1.msra.mxu0 0.0
  %174 = vmatprep.subr.mxu0 0.0
  %175 = vmatpush1.msra.mxu0 0.0
  %176 = vmatprep.subr.mxu0 0.0
  %177 = vmatpush1.msra.mxu0 0.0
  %178 = vmatprep.subr.mxu0 0.0
  %179 = vmatpush1.msra.mxu0 0.0
  %180 = vmatprep.subr.mxu0 0.0
  %181 = vmatpush1.msra.mxu0 0.0
  %182 = vmatprep.subr.mxu0 0.0
  %183 = vmatpush1.msra.mxu0 0.0
  %184 = vmatprep.subr.mxu0 0.0
  %185 = vmatpush1.msra.mxu0 0.0
  %186 = vmatprep.subr.mxu0 0.0
  %187 = vmatpush1.msra.mxu0 0.0
  %188 = vmatprep.subr.mxu0 0.0
  %189 = vmatpush1.msra.mxu0 0.0
  %190 = vmatprep.mubr.f32.mxu0 0.0
  %191 = vmatmul.mubr.f32.gmra.mrb[0].mxu0 %v42
  %v192 = vpop.f32.mrb[0].mxu0
  %v193 = vadd.f32 0.0, %v192
  %v194 = vpop.f32.mrb[0].mxu0
  %195 = vmatprep.mubr.f32.mxu0 0.0
  %196 = vmatmul.mubr.f32.gmra.mrb[0].mxu0 %v45
  %v197 = vpop.f32.mrb[0].mxu0
  %v198 = vadd.f32 0.0, %v197
  %v199 = vpop.f32.mrb[0].mxu0
  %200 = vdwg.mxu0
  %v201 = vld [vmem:[%s4] sm:$0xff]
  %v202 = vld [vmem:[%s4 + $0x8] sm:$0xff]
  %v203 = vld [vmem:[%s4 + $0x10] sm:$0xff]
  %v204 = vld [vmem:[%s4 + $0x18] sm:$0xff]
  %205 = vmatprep.subr.mxu0 0.0
  %206 = vmatpush1.msra.mxu0 %v201
  %207 = vmatprep.subr.mxu0 0.0
  %208 = vmatpush1.msra.mxu0 %v202
  %209 = vmatprep.subr.mxu0 0.0
  %210 = vmatpush1.msra.mxu0 %v203
  %211 = vmatprep.subr.mxu0 0.0
  %212 = vmatpush1.msra.mxu0 %v204
  %213 = vmatprep.subr.mxu0 0.0
  %214 = vmatpush1.msra.mxu0 0.0
  %215 = vmatprep.subr.mxu0 0.0
  %216 = vmatpush1.msra.mxu0 0.0
  %217 = vmatprep.subr.mxu0 0.0
  %218 = vmatpush1.msra.mxu0 0.0
  %219 = vmatprep.subr.mxu0 0.0
  %220 = vmatpush1.msra.mxu0 0.0
  %221 = vmatprep.subr.mxu0 0.0
  %222 = vmatpush1.msra.mxu0 0.0
  %223 = vmatprep.subr.mxu0 0.0
  %224 = vmatpush1.msra.mxu0 0.0
  %225 = vmatprep.subr.mxu0 0.0
  %226 = vmatpush1.msra.mxu0 0.0
  %227 = vmatprep.subr.mxu0 0.0
  %228 = vmatpush1.msra.mxu0 0.0
  %229 = vmatprep.subr.mxu0 0.0
  %230 = vmatpush1.msra.mxu0 0.0
  %231 = vmatprep.subr.mxu0 0.0
  %232 = vmatpush1.msra.mxu0 0.0
  %233 = vmatprep.subr.mxu0 0.0
  %234 = vmatpush1.msra.mxu0 0.0
  %235 = vmatprep.subr.mxu0 0.0
  %236 = vmatpush1.msra.mxu0 0.0
  %237 = vmatprep.subr.mxu0 0.0
  %238 = vmatpush1.msra.mxu0 0.0
  %239 = vmatprep.subr.mxu0 0.0
  %240 = vmatpush1.msra.mxu0 0.0
  %241 = vmatprep.subr.mxu0 0.0
  %242 = vmatpush1.msra.mxu0 0.0
  %243 = vmatprep.subr.mxu0 0.0
  %244 = vmatpush1.msra.mxu0 0.0
  %245 = vmatprep.subr.mxu0 0.0
  %246 = vmatpush1.msra.mxu0 0.0
  %247 = vmatprep.subr.mxu0 0.0
  %248 = vmatpush1.msra.mxu0 0.0
  %249 = vmatprep.subr.mxu0 0.0
  %250 = vmatpush1.msra.mxu0 0.0
  %251 = vmatprep.subr.mxu0 0.0
  %252 = vmatpush1.msra.mxu0 0.0
  %253 = vmatprep.subr.mxu0 0.0
  %254 = vmatpush1.msra.mxu0 0.0
  %255 = vmatprep.subr.mxu0 0.0
  %256 = vmatpush1.msra.mxu0 0.0
  %257 = vmatprep.subr.mxu0 0.0
  %258 = vmatpush1.msra.mxu0 0.0
  %259 = vmatprep.subr.mxu0 0.0
  %260 = vmatpush1.msra.mxu0 0.0
  %261 = vmatprep.subr.mxu0 0.0
  %262 = vmatpush1.msra.mxu0 0.0
  %263 = vmatprep.subr.mxu0 0.0
  %264 = vmatpush1.msra.mxu0 0.0
  %265 = vmatprep.subr.mxu0 0.0
  %266 = vmatpush1.msra.mxu0 0.0
  %267 = vmatprep.subr.mxu0 0.0
  %268 = vmatpush1.msra.mxu0 0.0
  %269 = vmatprep.mubr.f32.mxu0 0.0
  %270 = vmatmul.mubr.f32.gmra.mrb[0].mxu0 %v42
  %v271 = vpop.f32.mrb[0].mxu0
  %v272 = vadd.f32 0.0, %v271
  %v273 = vpop.f32.mrb[0].mxu0
  %274 = vmatprep.mubr.f32.mxu0 0.0
  %275 = vmatmul.mubr.f32.gmra.mrb[0].mxu0 %v45
  %v276 = vpop.f32.mrb[0].mxu0
  %v277 = vadd.f32 0.0, %v276
  %v278 = vpop.f32.mrb[0].mxu0
  %279 = vdwg.mxu0
  %280 = vxpose.xlu0.b32.start [1/16] %v272, 128
  %281 = vxpose.xlu0.b32.cont [2/16] %v277, 128
  %282 = vxpose.xlu0.b32.cont [3/16] 0.0, 128
  %283 = vxpose.xlu0.b32.cont [4/16] 0.0, 128
  %284 = vxpose.xlu0.b32.cont [5/16] 0.0, 128
  %285 = vxpose.xlu0.b32.cont [6/16] 0.0, 128
  %286 = vxpose.xlu0.b32.cont [7/16] 0.0, 128
  %287 = vxpose.xlu0.b32.cont [8/16] 0.0, 128
  %288 = vxpose.xlu0.b32.cont [9/16] 0.0, 128
  %289 = vxpose.xlu0.b32.cont [10/16] 0.0, 128
  %290 = vxpose.xlu0.b32.cont [11/16] 0.0, 128
  %291 = vxpose.xlu0.b32.cont [12/16] 0.0, 128
  %292 = vxpose.xlu0.b32.cont [13/16] 0.0, 128
  %293 = vxpose.xlu0.b32.cont [14/16] 0.0, 128
  %294 = vxpose.xlu0.b32.cont [15/16] 0.0, 128
  %295 = vxpose.xlu0.b32.end [16/16] 0.0, 128
  %v296 = vpop.trf.xlu0
  %v297 = vpop.trf.xlu0
  %v298 = vpop.trf.xlu0
  %v299 = vpop.trf.xlu0
  %v300 = vpop.trf.xlu0
  %v301 = vpop.trf.xlu0
  %v302 = vpop.trf.xlu0
  %v303 = vpop.trf.xlu0
  %v304 = vpop.trf.xlu0
  %v305 = vpop.trf.xlu0
  %v306 = vpop.trf.xlu0
  %v307 = vpop.trf.xlu0
  %v308 = vpop.trf.xlu0
  %v309 = vpop.trf.xlu0
  %v310 = vpop.trf.xlu0
  %v311 = vpop.trf.xlu0
  %313 = vset.pattern.permute.xlu0 0
  %314 = vperm.xlu0 %313, %v193
  %v315 = vpop.permute.xlu0 %314
  %318 = vset.pattern.permute.xlu0 0
  %319 = vperm.xlu0 %318, %v198
  %v320 = vpop.permute.xlu0 %319
  %v322 = vlaneseq
  %v323 = vshrl.u32 %v322, 7
  %v324 = vsub.s32 0, %v323
  %v325 = vrot.slane %v296, %v324
  %v326 = vadd.f32 %v315, %v325
  %v327 = vadd.f32 %v320, %v325
  %vm328 = vcmp.gt.f32.partialorder %v326, 0.0
  %vm329 = vcmp.gt.f32.partialorder %v327, 0.0
  %v330 = vmul.f32 %v326, 0.2
  %v331 = vmul.f32 %v327, 0.2
  %v332 = vsel %vm328, %v326, %v330
  %v333 = vsel %vm329, %v327, %v331
  %v334 = vadd.f32 %v332, %v34
  %v335 = vadd.f32 %v333, %v35
  %vm336 = vcmask 130048
  %v337 = vsel %vm336, %v334, -inf
  %338 = vmax.xlane.f32.xlu0 %v337
  %v339 = vpop.xlane.xlu0 %338
  %v340 = vsel %vm336, %v335, -inf
  %341 = vmax.xlane.f32.xlu0 %v340
  %v342 = vpop.xlane.xlu0 %341
  %v343 = vsub.f32 %v334, %v339
  %v344 = vsub.f32 %v335, %v342
  %v345 = vmul.f32 %v343, 1.442695
  %v346 = vpow.pop %v345
  %v347 = vmul.f32 %v344, 1.442695
  %v348 = vpow.pop %v347
  %v349 = vsel %vm336, %v346, 0.0
  %350 = vadd.xlane.f32.xlu0 %v349
  %v351 = vpop.xlane.xlu0 %350
  %v352 = vsel %vm336, %v348, 0.0
  %353 = vadd.xlane.f32.xlu0 %v352
  %v354 = vpop.xlane.xlu0 %353
  %v355 = vrcp.pop %v351
  %v356 = vrcp.pop %v354
  %v357 = vmul.f32 %v346, %v355
  %v358 = vmul.f32 %v348, %v356
  %v359 = vpack.c.bf16 %v358, %v357
  %v360 = vpack.c.bf16 %v119, %v114
  %v362 = vsel %vm336, %v359, 0
  %364 = vmatprep.subr.bf16.mxu0 0
  %365 = vmatpush1.bf16.msra.mxu0 %v360
  %366 = vmatprep.subr.bf16.mxu0 0
  %367 = vmatpush1.bf16.msra.mxu0 0
  %368 = vmatprep.subr.bf16.mxu0 0
  %369 = vmatpush1.bf16.msra.mxu0 0
  %370 = vmatprep.subr.bf16.mxu0 0
  %371 = vmatpush1.bf16.msra.mxu0 0
  %372 = vmatprep.subr.bf16.mxu0 0
  %373 = vmatpush1.bf16.msra.mxu0 0
  %374 = vmatprep.subr.bf16.mxu0 0
  %375 = vmatpush1.bf16.msra.mxu0 0
  %376 = vmatprep.subr.bf16.mxu0 0
  %377 = vmatpush1.bf16.msra.mxu0 0
  %378 = vmatprep.subr.bf16.mxu0 0
  %379 = vmatpush1.bf16.msra.mxu0 0
  %380 = vmatprep.subr.bf16.mxu0 0
  %381 = vmatpush1.bf16.msra.mxu0 0
  %382 = vmatprep.subr.bf16.mxu0 0
  %383 = vmatpush1.bf16.msra.mxu0 0
  %384 = vmatprep.subr.bf16.mxu0 0
  %385 = vmatpush1.bf16.msra.mxu0 0
  %386 = vmatprep.subr.bf16.mxu0 0
  %387 = vmatpush1.bf16.msra.mxu0 0
  %388 = vmatprep.subr.bf16.mxu0 0
  %389 = vmatpush1.bf16.msra.mxu0 0
  %390 = vmatprep.subr.bf16.mxu0 0
  %391 = vmatpush1.bf16.msra.mxu0 0
  %392 = vmatprep.subr.bf16.mxu0 0
  %393 = vmatpush1.bf16.msra.mxu0 0
  %394 = vmatprep.subr.bf16.mxu0 0
  %395 = vmatpush1.bf16.msra.mxu0 0
  %396 = vmatprep.mubr.bf16.mxu0 0
  %397 = vmatmul.mubr.bf16.gmra.mrb[0].mxu0 %v362
  %v398 = vpop.f32.mrb[0].mxu0
  %v399 = vadd.f32 0.0, %v398
  %v400 = vpop.f32.mrb[0].mxu0
  %v401 = vpop.f32.mrb[0].mxu0
  %v402 = vadd.f32 0.0, %v401
  %v403 = vpop.f32.mrb[0].mxu0
  %404 = vdwg.mxu0
  %vm405 = vcmp.gt.f32.partialorder %v399, 0.0
  %vm406 = vcmp.gt.f32.partialorder %v402, 0.0
  %v407 = vmin.f32 %v399, 0.0
  %v408 = vmin.f32 %v402, 0.0
  %v409 = vmul.f32 %v407, 1.442695
  %v410 = vpow.pop %v409
  %v411 = vmul.f32 %v408, 1.442695
  %v412 = vpow.pop %v411
  %v413 = vsub.f32 %v410, 1.0
  %v414 = vsub.f32 %v412, 1.0
  %v415 = vsel %vm405, %v399, %v413
  %v416 = vsel %vm406, %v402, %v414
  %417 = vset.pattern.permute.xlu0 1
  %418 = vperm.xlu0 %417, %v193
  %v419 = vpop.permute.xlu0 %418
  %421 = vset.pattern.permute.xlu0 1
  %422 = vperm.xlu0 %421, %v198
  %v423 = vpop.permute.xlu0 %422
  %v425 = vlaneseq
  %v426 = vshrl.u32 %v425, 7
  %v427 = vsub.s32 1, %v426
  %v428 = vrot.slane %v296, %v427
  %v429 = vadd.f32 %v419, %v428
  %v430 = vadd.f32 %v423, %v428
  %vm431 = vcmp.gt.f32.partialorder %v429, 0.0
  %vm432 = vcmp.gt.f32.partialorder %v430, 0.0
  %v433 = vmul.f32 %v429, 0.2
  %v434 = vmul.f32 %v430, 0.2
  %v435 = vsel %vm431, %v429, %v433
  %v436 = vsel %vm432, %v430, %v434
  %v437 = vadd.f32 %v435, %v34
  %v438 = vadd.f32 %v436, %v35
  %v439 = vsel %vm336, %v437, -inf
  %440 = vmax.xlane.f32.xlu0 %v439
  %v441 = vpop.xlane.xlu0 %440
  %v442 = vsel %vm336, %v438, -inf
  %443 = vmax.xlane.f32.xlu0 %v442
  %v444 = vpop.xlane.xlu0 %443
  %v445 = vsub.f32 %v437, %v441
  %v446 = vsub.f32 %v438, %v444
  %v447 = vmul.f32 %v445, 1.442695
  %v448 = vpow.pop %v447
  %v449 = vmul.f32 %v446, 1.442695
  %v450 = vpow.pop %v449
  %v451 = vsel %vm336, %v448, 0.0
  %452 = vadd.xlane.f32.xlu0 %v451
  %v453 = vpop.xlane.xlu0 %452
  %v454 = vsel %vm336, %v450, 0.0
  %455 = vadd.xlane.f32.xlu0 %v454
  %v456 = vpop.xlane.xlu0 %455
  %v457 = vrcp.pop %v453
  %v458 = vrcp.pop %v456
  %v459 = vmul.f32 %v448, %v457
  %v460 = vmul.f32 %v450, %v458
  %v461 = vpack.c.bf16 %v460, %v459
  %463 = vrot.lane.b32.xlu0 %v360, 112
  %v464 = vpop.permute.xlu0 %463
  %v467 = vsel %vm336, %v461, 0
  %469 = vmatprep.subr.bf16.mxu0 0
  %470 = vmatpush1.bf16.msra.mxu0 %v464
  %471 = vmatprep.subr.bf16.mxu0 0
  %472 = vmatpush1.bf16.msra.mxu0 0
  %473 = vmatprep.subr.bf16.mxu0 0
  %474 = vmatpush1.bf16.msra.mxu0 0
  %475 = vmatprep.subr.bf16.mxu0 0
  %476 = vmatpush1.bf16.msra.mxu0 0
  %477 = vmatprep.subr.bf16.mxu0 0
  %478 = vmatpush1.bf16.msra.mxu0 0
  %479 = vmatprep.subr.bf16.mxu0 0
  %480 = vmatpush1.bf16.msra.mxu0 0
  %481 = vmatprep.subr.bf16.mxu0 0
  %482 = vmatpush1.bf16.msra.mxu0 0
  %483 = vmatprep.subr.bf16.mxu0 0
  %484 = vmatpush1.bf16.msra.mxu0 0
  %485 = vmatprep.subr.bf16.mxu0 0
  %486 = vmatpush1.bf16.msra.mxu0 0
  %487 = vmatprep.subr.bf16.mxu0 0
  %488 = vmatpush1.bf16.msra.mxu0 0
  %489 = vmatprep.subr.bf16.mxu0 0
  %490 = vmatpush1.bf16.msra.mxu0 0
  %491 = vmatprep.subr.bf16.mxu0 0
  %492 = vmatpush1.bf16.msra.mxu0 0
  %493 = vmatprep.subr.bf16.mxu0 0
  %494 = vmatpush1.bf16.msra.mxu0 0
  %495 = vmatprep.subr.bf16.mxu0 0
  %496 = vmatpush1.bf16.msra.mxu0 0
  %497 = vmatprep.subr.bf16.mxu0 0
  %498 = vmatpush1.bf16.msra.mxu0 0
  %499 = vmatprep.subr.bf16.mxu0 0
  %500 = vmatpush1.bf16.msra.mxu0 0
  %501 = vmatprep.mubr.bf16.mxu0 0
  %502 = vmatmul.mubr.bf16.gmra.mrb[0].mxu0 %v467
  %v503 = vpop.f32.mrb[0].mxu0
  %v504 = vadd.f32 0.0, %v503
  %v505 = vpop.f32.mrb[0].mxu0
  %v506 = vpop.f32.mrb[0].mxu0
  %v507 = vadd.f32 0.0, %v506
  %v508 = vpop.f32.mrb[0].mxu0
  %509 = vdwg.mxu0
  %vm510 = vcmp.gt.f32.partialorder %v504, 0.0
  %vm511 = vcmp.gt.f32.partialorder %v507, 0.0
  %v512 = vmin.f32 %v504, 0.0
  %v513 = vmin.f32 %v507, 0.0
  %v514 = vmul.f32 %v512, 1.442695
  %v515 = vpow.pop %v514
  %v516 = vmul.f32 %v513, 1.442695
  %v517 = vpow.pop %v516
  %v518 = vsub.f32 %v515, 1.0
  %v519 = vsub.f32 %v517, 1.0
  %v520 = vsel %vm510, %v504, %v518
  %v521 = vsel %vm511, %v507, %v519
  %522 = vset.pattern.permute.xlu0 2
  %523 = vperm.xlu0 %522, %v193
  %v524 = vpop.permute.xlu0 %523
  %526 = vset.pattern.permute.xlu0 2
  %527 = vperm.xlu0 %526, %v198
  %v528 = vpop.permute.xlu0 %527
  %v530 = vlaneseq
  %v531 = vshrl.u32 %v530, 7
  %v532 = vsub.s32 2, %v531
  %v533 = vrot.slane %v296, %v532
  %v534 = vadd.f32 %v524, %v533
  %v535 = vadd.f32 %v528, %v533
  %vm536 = vcmp.gt.f32.partialorder %v534, 0.0
  %vm537 = vcmp.gt.f32.partialorder %v535, 0.0
  %v538 = vmul.f32 %v534, 0.2
  %v539 = vmul.f32 %v535, 0.2
  %v540 = vsel %vm536, %v534, %v538
  %v541 = vsel %vm537, %v535, %v539
  %v542 = vadd.f32 %v540, %v34
  %v543 = vadd.f32 %v541, %v35
  %v544 = vsel %vm336, %v542, -inf
  %545 = vmax.xlane.f32.xlu0 %v544
  %v546 = vpop.xlane.xlu0 %545
  %v547 = vsel %vm336, %v543, -inf
  %548 = vmax.xlane.f32.xlu0 %v547
  %v549 = vpop.xlane.xlu0 %548
  %v550 = vsub.f32 %v542, %v546
  %v551 = vsub.f32 %v543, %v549
  %v552 = vmul.f32 %v550, 1.442695
  %v553 = vpow.pop %v552
  %v554 = vmul.f32 %v551, 1.442695
  %v555 = vpow.pop %v554
  %v556 = vsel %vm336, %v553, 0.0
  %557 = vadd.xlane.f32.xlu0 %v556
  %v558 = vpop.xlane.xlu0 %557
  %v559 = vsel %vm336, %v555, 0.0
  %560 = vadd.xlane.f32.xlu0 %v559
  %v561 = vpop.xlane.xlu0 %560
  %v562 = vrcp.pop %v558
  %v563 = vrcp.pop %v561
  %v564 = vmul.f32 %v553, %v562
  %v565 = vmul.f32 %v555, %v563
  %v566 = vpack.c.bf16 %v565, %v564
  %567 = vrot.lane.b32.xlu0 %v360, 96
  %v568 = vpop.permute.xlu0 %567
  %v571 = vsel %vm336, %v566, 0
  %573 = vmatprep.subr.bf16.mxu0 0
  %574 = vmatpush1.bf16.msra.mxu0 %v568
  %575 = vmatprep.subr.bf16.mxu0 0
  %576 = vmatpush1.bf16.msra.mxu0 0
  %577 = vmatprep.subr.bf16.mxu0 0
  %578 = vmatpush1.bf16.msra.mxu0 0
  %579 = vmatprep.subr.bf16.mxu0 0
  %580 = vmatpush1.bf16.msra.mxu0 0
  %581 = vmatprep.subr.bf16.mxu0 0
  %582 = vmatpush1.bf16.msra.mxu0 0
  %583 = vmatprep.subr.bf16.mxu0 0
  %584 = vmatpush1.bf16.msra.mxu0 0
  %585 = vmatprep.subr.bf16.mxu0 0
  %586 = vmatpush1.bf16.msra.mxu0 0
  %587 = vmatprep.subr.bf16.mxu0 0
  %588 = vmatpush1.bf16.msra.mxu0 0
  %589 = vmatprep.subr.bf16.mxu0 0
  %590 = vmatpush1.bf16.msra.mxu0 0
  %591 = vmatprep.subr.bf16.mxu0 0
  %592 = vmatpush1.bf16.msra.mxu0 0
  %593 = vmatprep.subr.bf16.mxu0 0
  %594 = vmatpush1.bf16.msra.mxu0 0
  %595 = vmatprep.subr.bf16.mxu0 0
  %596 = vmatpush1.bf16.msra.mxu0 0
  %597 = vmatprep.subr.bf16.mxu0 0
  %598 = vmatpush1.bf16.msra.mxu0 0
  %599 = vmatprep.subr.bf16.mxu0 0
  %600 = vmatpush1.bf16.msra.mxu0 0
  %601 = vmatprep.subr.bf16.mxu0 0
  %602 = vmatpush1.bf16.msra.mxu0 0
  %603 = vmatprep.subr.bf16.mxu0 0
  %604 = vmatpush1.bf16.msra.mxu0 0
  %605 = vmatprep.mubr.bf16.mxu0 0
  %606 = vmatmul.mubr.bf16.gmra.mrb[0].mxu0 %v571
  %v607 = vpop.f32.mrb[0].mxu0
  %v608 = vadd.f32 0.0, %v607
  %v609 = vpop.f32.mrb[0].mxu0
  %v610 = vpop.f32.mrb[0].mxu0
  %v611 = vadd.f32 0.0, %v610
  %v612 = vpop.f32.mrb[0].mxu0
  %613 = vdwg.mxu0
  %vm614 = vcmp.gt.f32.partialorder %v608, 0.0
  %vm615 = vcmp.gt.f32.partialorder %v611, 0.0
  %v616 = vmin.f32 %v608, 0.0
  %v617 = vmin.f32 %v611, 0.0
  %v618 = vmul.f32 %v616, 1.442695
  %v619 = vpow.pop %v618
  %v620 = vmul.f32 %v617, 1.442695
  %v621 = vpow.pop %v620
  %v622 = vsub.f32 %v619, 1.0
  %v623 = vsub.f32 %v621, 1.0
  %v624 = vsel %vm614, %v608, %v622
  %v625 = vsel %vm615, %v611, %v623
  %626 = vset.pattern.permute.xlu0 3
  %627 = vperm.xlu0 %626, %v193
  %v628 = vpop.permute.xlu0 %627
  %630 = vset.pattern.permute.xlu0 3
  %631 = vperm.xlu0 %630, %v198
  %v632 = vpop.permute.xlu0 %631
  %v634 = vlaneseq
  %v635 = vshrl.u32 %v634, 7
  %v636 = vsub.s32 3, %v635
  %v637 = vrot.slane %v296, %v636
  %v638 = vadd.f32 %v628, %v637
  %v639 = vadd.f32 %v632, %v637
  %vm640 = vcmp.gt.f32.partialorder %v638, 0.0
  %vm641 = vcmp.gt.f32.partialorder %v639, 0.0
  %v642 = vmul.f32 %v638, 0.2
  %v643 = vmul.f32 %v639, 0.2
  %v644 = vsel %vm640, %v638, %v642
  %v645 = vsel %vm641, %v639, %v643
  %v646 = vadd.f32 %v644, %v34
  %v647 = vadd.f32 %v645, %v35
  %v648 = vsel %vm336, %v646, -inf
  %649 = vmax.xlane.f32.xlu0 %v648
  %v650 = vpop.xlane.xlu0 %649
  %v651 = vsel %vm336, %v647, -inf
  %652 = vmax.xlane.f32.xlu0 %v651
  %v653 = vpop.xlane.xlu0 %652
  %v654 = vsub.f32 %v646, %v650
  %v655 = vsub.f32 %v647, %v653
  %v656 = vmul.f32 %v654, 1.442695
  %v657 = vpow.pop %v656
  %v658 = vmul.f32 %v655, 1.442695
  %v659 = vpow.pop %v658
  %v660 = vsel %vm336, %v657, 0.0
  %661 = vadd.xlane.f32.xlu0 %v660
  %v662 = vpop.xlane.xlu0 %661
  %v663 = vsel %vm336, %v659, 0.0
  %664 = vadd.xlane.f32.xlu0 %v663
  %v665 = vpop.xlane.xlu0 %664
  %v666 = vrcp.pop %v662
  %v667 = vrcp.pop %v665
  %v668 = vmul.f32 %v657, %v666
  %v669 = vmul.f32 %v659, %v667
  %v670 = vpack.c.bf16 %v669, %v668
  %671 = vrot.lane.b32.xlu0 %v360, 80
  %v672 = vpop.permute.xlu0 %671
  %v675 = vsel %vm336, %v670, 0
  %677 = vmatprep.subr.bf16.mxu0 0
  %678 = vmatpush1.bf16.msra.mxu0 %v672
  %679 = vmatprep.subr.bf16.mxu0 0
  %680 = vmatpush1.bf16.msra.mxu0 0
  %681 = vmatprep.subr.bf16.mxu0 0
  %682 = vmatpush1.bf16.msra.mxu0 0
  %683 = vmatprep.subr.bf16.mxu0 0
  %684 = vmatpush1.bf16.msra.mxu0 0
  %685 = vmatprep.subr.bf16.mxu0 0
  %686 = vmatpush1.bf16.msra.mxu0 0
  %687 = vmatprep.subr.bf16.mxu0 0
  %688 = vmatpush1.bf16.msra.mxu0 0
  %689 = vmatprep.subr.bf16.mxu0 0
  %690 = vmatpush1.bf16.msra.mxu0 0
  %691 = vmatprep.subr.bf16.mxu0 0
  %692 = vmatpush1.bf16.msra.mxu0 0
  %693 = vmatprep.subr.bf16.mxu0 0
  %694 = vmatpush1.bf16.msra.mxu0 0
  %695 = vmatprep.subr.bf16.mxu0 0
  %696 = vmatpush1.bf16.msra.mxu0 0
  %697 = vmatprep.subr.bf16.mxu0 0
  %698 = vmatpush1.bf16.msra.mxu0 0
  %699 = vmatprep.subr.bf16.mxu0 0
  %700 = vmatpush1.bf16.msra.mxu0 0
  %701 = vmatprep.subr.bf16.mxu0 0
  %702 = vmatpush1.bf16.msra.mxu0 0
  %703 = vmatprep.subr.bf16.mxu0 0
  %704 = vmatpush1.bf16.msra.mxu0 0
  %705 = vmatprep.subr.bf16.mxu0 0
  %706 = vmatpush1.bf16.msra.mxu0 0
  %707 = vmatprep.subr.bf16.mxu0 0
  %708 = vmatpush1.bf16.msra.mxu0 0
  %709 = vmatprep.mubr.bf16.mxu0 0
  %710 = vmatmul.mubr.bf16.gmra.mrb[0].mxu0 %v675
  %v711 = vpop.f32.mrb[0].mxu0
  %v712 = vadd.f32 0.0, %v711
  %v713 = vpop.f32.mrb[0].mxu0
  %v714 = vpop.f32.mrb[0].mxu0
  %v715 = vadd.f32 0.0, %v714
  %v716 = vpop.f32.mrb[0].mxu0
  %717 = vdwg.mxu0
  %vm718 = vcmp.gt.f32.partialorder %v712, 0.0
  %vm719 = vcmp.gt.f32.partialorder %v715, 0.0
  %v720 = vmin.f32 %v712, 0.0
  %v721 = vmin.f32 %v715, 0.0
  %v722 = vmul.f32 %v720, 1.442695
  %v723 = vpow.pop %v722
  %v724 = vmul.f32 %v721, 1.442695
  %v725 = vpow.pop %v724
  %v726 = vsub.f32 %v723, 1.0
  %v727 = vsub.f32 %v725, 1.0
  %v728 = vsel %vm718, %v712, %v726
  %v729 = vsel %vm719, %v715, %v727
  %732 = vrot.lane.b32.xlu0 %v520, 16
  %v733 = vpop.permute.xlu0 %732
  %734 = vrot.lane.b32.xlu0 %v521, 16
  %v735 = vpop.permute.xlu0 %734
  %740 = vrot.lane.b32.xlu0 %v624, 32
  %v741 = vpop.permute.xlu0 %740
  %742 = vrot.lane.b32.xlu0 %v625, 32
  %v743 = vpop.permute.xlu0 %742
  %748 = vrot.lane.b32.xlu0 %v728, 48
  %v749 = vpop.permute.xlu0 %748
  %750 = vrot.lane.b32.xlu0 %v729, 48
  %v751 = vpop.permute.xlu0 %750
  %v754 = vsel %vm336, %v415, %v733
  %v755 = vsel %vm336, %v416, %v735
  %v756 = vsel %vm40, %v754, %v741
  %v757 = vsel %vm40, %v755, %v743
  %vm758 = vcmask 392192
  %v759 = vsel %vm758, %v756, %v749
  %v760 = vsel %vm758, %v757, %v751
  %v761 = vld [vmem:[%s5] sm:$0xff]
  %v762 = vld [vmem:[%s5 + $0x8] sm:$0xff]
  %v763 = vld [vmem:[%s5 + $0x10] sm:$0xff]
  %v764 = vld [vmem:[%s5 + $0x18] sm:$0xff]
  %v765 = vld [vmem:[%s5 + $0x20] sm:$0xff]
  %v766 = vld [vmem:[%s5 + $0x28] sm:$0xff]
  %v767 = vld [vmem:[%s5 + $0x30] sm:$0xff]
  %v768 = vld [vmem:[%s5 + $0x38] sm:$0xff]
  %vm769 = vcmask 523264
  %v771 = vsel %vm769, %v759, 0
  %v774 = vsel %vm769, %v760, 0
  %776 = vmatprep.subr.mxu0 0.0
  %777 = vmatpush1.msra.mxu0 %v761
  %778 = vmatprep.subr.mxu0 0.0
  %779 = vmatpush1.msra.mxu0 %v762
  %780 = vmatprep.subr.mxu0 0.0
  %781 = vmatpush1.msra.mxu0 %v763
  %782 = vmatprep.subr.mxu0 0.0
  %783 = vmatpush1.msra.mxu0 %v764
  %784 = vmatprep.subr.mxu0 0.0
  %785 = vmatpush1.msra.mxu0 %v765
  %786 = vmatprep.subr.mxu0 0.0
  %787 = vmatpush1.msra.mxu0 %v766
  %788 = vmatprep.subr.mxu0 0.0
  %789 = vmatpush1.msra.mxu0 %v767
  %790 = vmatprep.subr.mxu0 0.0
  %791 = vmatpush1.msra.mxu0 %v768
  %792 = vmatprep.subr.mxu0 0.0
  %793 = vmatpush1.msra.mxu0 0.0
  %794 = vmatprep.subr.mxu0 0.0
  %795 = vmatpush1.msra.mxu0 0.0
  %796 = vmatprep.subr.mxu0 0.0
  %797 = vmatpush1.msra.mxu0 0.0
  %798 = vmatprep.subr.mxu0 0.0
  %799 = vmatpush1.msra.mxu0 0.0
  %800 = vmatprep.subr.mxu0 0.0
  %801 = vmatpush1.msra.mxu0 0.0
  %802 = vmatprep.subr.mxu0 0.0
  %803 = vmatpush1.msra.mxu0 0.0
  %804 = vmatprep.subr.mxu0 0.0
  %805 = vmatpush1.msra.mxu0 0.0
  %806 = vmatprep.subr.mxu0 0.0
  %807 = vmatpush1.msra.mxu0 0.0
  %808 = vmatprep.subr.mxu0 0.0
  %809 = vmatpush1.msra.mxu0 0.0
  %810 = vmatprep.subr.mxu0 0.0
  %811 = vmatpush1.msra.mxu0 0.0
  %812 = vmatprep.subr.mxu0 0.0
  %813 = vmatpush1.msra.mxu0 0.0
  %814 = vmatprep.subr.mxu0 0.0
  %815 = vmatpush1.msra.mxu0 0.0
  %816 = vmatprep.subr.mxu0 0.0
  %817 = vmatpush1.msra.mxu0 0.0
  %818 = vmatprep.subr.mxu0 0.0
  %819 = vmatpush1.msra.mxu0 0.0
  %820 = vmatprep.subr.mxu0 0.0
  %821 = vmatpush1.msra.mxu0 0.0
  %822 = vmatprep.subr.mxu0 0.0
  %823 = vmatpush1.msra.mxu0 0.0
  %824 = vmatprep.subr.mxu0 0.0
  %825 = vmatpush1.msra.mxu0 0.0
  %826 = vmatprep.subr.mxu0 0.0
  %827 = vmatpush1.msra.mxu0 0.0
  %828 = vmatprep.subr.mxu0 0.0
  %829 = vmatpush1.msra.mxu0 0.0
  %830 = vmatprep.subr.mxu0 0.0
  %831 = vmatpush1.msra.mxu0 0.0
  %832 = vmatprep.subr.mxu0 0.0
  %833 = vmatpush1.msra.mxu0 0.0
  %834 = vmatprep.subr.mxu0 0.0
  %835 = vmatpush1.msra.mxu0 0.0
  %836 = vmatprep.subr.mxu0 0.0
  %837 = vmatpush1.msra.mxu0 0.0
  %838 = vmatprep.subr.mxu0 0.0
  %839 = vmatpush1.msra.mxu0 0.0
  %840 = vmatprep.mubr.f32.mxu0 0.0
  %841 = vmatmul.mubr.f32.gmra.mrb[0].mxu0 %v771
  %v842 = vpop.f32.mrb[0].mxu0
  %v843 = vadd.f32 0.0, %v842
  %v844 = vpop.f32.mrb[0].mxu0
  %845 = vmatprep.mubr.f32.mxu0 0.0
  %846 = vmatmul.mubr.f32.gmra.mrb[0].mxu0 %v774
  %v847 = vpop.f32.mrb[0].mxu0
  %v848 = vadd.f32 0.0, %v847
  %v849 = vpop.f32.mrb[0].mxu0
  %850 = vdwg.mxu0
  %v851 = vld [vmem:[%s6] sm:$0xff]
  %v852 = vld [vmem:[%s6 + $0x8] sm:$0xff]
  %v853 = vld [vmem:[%s6 + $0x10] sm:$0xff]
  %v854 = vld [vmem:[%s6 + $0x18] sm:$0xff]
  %v855 = vld [vmem:[%s6 + $0x20] sm:$0xff]
  %v856 = vld [vmem:[%s6 + $0x28] sm:$0xff]
  %v857 = vld [vmem:[%s6 + $0x30] sm:$0xff]
  %v858 = vld [vmem:[%s6 + $0x38] sm:$0xff]
  %859 = vmatprep.subr.mxu0 0.0
  %860 = vmatpush1.msra.mxu0 %v851
  %861 = vmatprep.subr.mxu0 0.0
  %862 = vmatpush1.msra.mxu0 %v852
  %863 = vmatprep.subr.mxu0 0.0
  %864 = vmatpush1.msra.mxu0 %v853
  %865 = vmatprep.subr.mxu0 0.0
  %866 = vmatpush1.msra.mxu0 %v854
  %867 = vmatprep.subr.mxu0 0.0
  %868 = vmatpush1.msra.mxu0 %v855
  %869 = vmatprep.subr.mxu0 0.0
  %870 = vmatpush1.msra.mxu0 %v856
  %871 = vmatprep.subr.mxu0 0.0
  %872 = vmatpush1.msra.mxu0 %v857
  %873 = vmatprep.subr.mxu0 0.0
  %874 = vmatpush1.msra.mxu0 %v858
  %875 = vmatprep.subr.mxu0 0.0
  %876 = vmatpush1.msra.mxu0 0.0
  %877 = vmatprep.subr.mxu0 0.0
  %878 = vmatpush1.msra.mxu0 0.0
  %879 = vmatprep.subr.mxu0 0.0
  %880 = vmatpush1.msra.mxu0 0.0
  %881 = vmatprep.subr.mxu0 0.0
  %882 = vmatpush1.msra.mxu0 0.0
  %883 = vmatprep.subr.mxu0 0.0
  %884 = vmatpush1.msra.mxu0 0.0
  %885 = vmatprep.subr.mxu0 0.0
  %886 = vmatpush1.msra.mxu0 0.0
  %887 = vmatprep.subr.mxu0 0.0
  %888 = vmatpush1.msra.mxu0 0.0
  %889 = vmatprep.subr.mxu0 0.0
  %890 = vmatpush1.msra.mxu0 0.0
  %891 = vmatprep.subr.mxu0 0.0
  %892 = vmatpush1.msra.mxu0 0.0
  %893 = vmatprep.subr.mxu0 0.0
  %894 = vmatpush1.msra.mxu0 0.0
  %895 = vmatprep.subr.mxu0 0.0
  %896 = vmatpush1.msra.mxu0 0.0
  %897 = vmatprep.subr.mxu0 0.0
  %898 = vmatpush1.msra.mxu0 0.0
  %899 = vmatprep.subr.mxu0 0.0
  %900 = vmatpush1.msra.mxu0 0.0
  %901 = vmatprep.subr.mxu0 0.0
  %902 = vmatpush1.msra.mxu0 0.0
  %903 = vmatprep.subr.mxu0 0.0
  %904 = vmatpush1.msra.mxu0 0.0
  %905 = vmatprep.subr.mxu0 0.0
  %906 = vmatpush1.msra.mxu0 0.0
  %907 = vmatprep.subr.mxu0 0.0
  %908 = vmatpush1.msra.mxu0 0.0
  %909 = vmatprep.subr.mxu0 0.0
  %910 = vmatpush1.msra.mxu0 0.0
  %911 = vmatprep.subr.mxu0 0.0
  %912 = vmatpush1.msra.mxu0 0.0
  %913 = vmatprep.subr.mxu0 0.0
  %914 = vmatpush1.msra.mxu0 0.0
  %915 = vmatprep.subr.mxu0 0.0
  %916 = vmatpush1.msra.mxu0 0.0
  %917 = vmatprep.subr.mxu0 0.0
  %918 = vmatpush1.msra.mxu0 0.0
  %919 = vmatprep.subr.mxu0 0.0
  %920 = vmatpush1.msra.mxu0 0.0
  %921 = vmatprep.subr.mxu0 0.0
  %922 = vmatpush1.msra.mxu0 0.0
  %923 = vmatprep.mubr.f32.mxu0 0.0
  %924 = vmatmul.mubr.f32.gmra.mrb[0].mxu0 %v771
  %v925 = vpop.f32.mrb[0].mxu0
  %v926 = vadd.f32 0.0, %v925
  %v927 = vpop.f32.mrb[0].mxu0
  %928 = vmatprep.mubr.f32.mxu0 0.0
  %929 = vmatmul.mubr.f32.gmra.mrb[0].mxu0 %v774
  %v930 = vpop.f32.mrb[0].mxu0
  %v931 = vadd.f32 0.0, %v930
  %v932 = vpop.f32.mrb[0].mxu0
  %933 = vdwg.mxu0
  %v934 = vld [vmem:[%s7] sm:$0xff]
  %v935 = vld [vmem:[%s7 + $0x8] sm:$0xff]
  %v936 = vld [vmem:[%s7 + $0x10] sm:$0xff]
  %v937 = vld [vmem:[%s7 + $0x18] sm:$0xff]
  %v938 = vld [vmem:[%s7 + $0x20] sm:$0xff]
  %v939 = vld [vmem:[%s7 + $0x28] sm:$0xff]
  %v940 = vld [vmem:[%s7 + $0x30] sm:$0xff]
  %v941 = vld [vmem:[%s7 + $0x38] sm:$0xff]
  %942 = vmatprep.subr.mxu0 0.0
  %943 = vmatpush1.msra.mxu0 %v934
  %944 = vmatprep.subr.mxu0 0.0
  %945 = vmatpush1.msra.mxu0 %v935
  %946 = vmatprep.subr.mxu0 0.0
  %947 = vmatpush1.msra.mxu0 %v936
  %948 = vmatprep.subr.mxu0 0.0
  %949 = vmatpush1.msra.mxu0 %v937
  %950 = vmatprep.subr.mxu0 0.0
  %951 = vmatpush1.msra.mxu0 %v938
  %952 = vmatprep.subr.mxu0 0.0
  %953 = vmatpush1.msra.mxu0 %v939
  %954 = vmatprep.subr.mxu0 0.0
  %955 = vmatpush1.msra.mxu0 %v940
  %956 = vmatprep.subr.mxu0 0.0
  %957 = vmatpush1.msra.mxu0 %v941
  %958 = vmatprep.subr.mxu0 0.0
  %959 = vmatpush1.msra.mxu0 0.0
  %960 = vmatprep.subr.mxu0 0.0
  %961 = vmatpush1.msra.mxu0 0.0
  %962 = vmatprep.subr.mxu0 0.0
  %963 = vmatpush1.msra.mxu0 0.0
  %964 = vmatprep.subr.mxu0 0.0
  %965 = vmatpush1.msra.mxu0 0.0
  %966 = vmatprep.subr.mxu0 0.0
  %967 = vmatpush1.msra.mxu0 0.0
  %968 = vmatprep.subr.mxu0 0.0
  %969 = vmatpush1.msra.mxu0 0.0
  %970 = vmatprep.subr.mxu0 0.0
  %971 = vmatpush1.msra.mxu0 0.0
  %972 = vmatprep.subr.mxu0 0.0
  %973 = vmatpush1.msra.mxu0 0.0
  %974 = vmatprep.subr.mxu0 0.0
  %975 = vmatpush1.msra.mxu0 0.0
  %976 = vmatprep.subr.mxu0 0.0
  %977 = vmatpush1.msra.mxu0 0.0
  %978 = vmatprep.subr.mxu0 0.0
  %979 = vmatpush1.msra.mxu0 0.0
  %980 = vmatprep.subr.mxu0 0.0
  %981 = vmatpush1.msra.mxu0 0.0
  %982 = vmatprep.subr.mxu0 0.0
  %983 = vmatpush1.msra.mxu0 0.0
  %984 = vmatprep.subr.mxu0 0.0
  %985 = vmatpush1.msra.mxu0 0.0
  %986 = vmatprep.subr.mxu0 0.0
  %987 = vmatpush1.msra.mxu0 0.0
  %988 = vmatprep.subr.mxu0 0.0
  %989 = vmatpush1.msra.mxu0 0.0
  %990 = vmatprep.subr.mxu0 0.0
  %991 = vmatpush1.msra.mxu0 0.0
  %992 = vmatprep.subr.mxu0 0.0
  %993 = vmatpush1.msra.mxu0 0.0
  %994 = vmatprep.subr.mxu0 0.0
  %995 = vmatpush1.msra.mxu0 0.0
  %996 = vmatprep.subr.mxu0 0.0
  %997 = vmatpush1.msra.mxu0 0.0
  %998 = vmatprep.subr.mxu0 0.0
  %999 = vmatpush1.msra.mxu0 0.0
  %1000 = vmatprep.subr.mxu0 0.0
  %1001 = vmatpush1.msra.mxu0 0.0
  %1002 = vmatprep.subr.mxu0 0.0
  %1003 = vmatpush1.msra.mxu0 0.0
  %1004 = vmatprep.subr.mxu0 0.0
  %1005 = vmatpush1.msra.mxu0 0.0
  %1006 = vmatprep.mubr.f32.mxu0 0.0
  %1007 = vmatmul.mubr.f32.gmra.mrb[0].mxu0 %v771
  %v1008 = vpop.f32.mrb[0].mxu0
  %v1009 = vadd.f32 0.0, %v1008
  %v1010 = vpop.f32.mrb[0].mxu0
  %1011 = vmatprep.mubr.f32.mxu0 0.0
  %1012 = vmatmul.mubr.f32.gmra.mrb[0].mxu0 %v774
  %v1013 = vpop.f32.mrb[0].mxu0
  %v1014 = vadd.f32 0.0, %v1013
  %v1015 = vpop.f32.mrb[0].mxu0
  %1016 = vdwg.mxu0
  %1017 = vxpose.xlu0.b32.start [1/16] %v1009, 128
  %1018 = vxpose.xlu0.b32.cont [2/16] %v1014, 128
  %1019 = vxpose.xlu0.b32.cont [3/16] 0.0, 128
  %1020 = vxpose.xlu0.b32.cont [4/16] 0.0, 128
  %1021 = vxpose.xlu0.b32.cont [5/16] 0.0, 128
  %1022 = vxpose.xlu0.b32.cont [6/16] 0.0, 128
  %1023 = vxpose.xlu0.b32.cont [7/16] 0.0, 128
  %1024 = vxpose.xlu0.b32.cont [8/16] 0.0, 128
  %1025 = vxpose.xlu0.b32.cont [9/16] 0.0, 128
  %1026 = vxpose.xlu0.b32.cont [10/16] 0.0, 128
  %1027 = vxpose.xlu0.b32.cont [11/16] 0.0, 128
  %1028 = vxpose.xlu0.b32.cont [12/16] 0.0, 128
  %1029 = vxpose.xlu0.b32.cont [13/16] 0.0, 128
  %1030 = vxpose.xlu0.b32.cont [14/16] 0.0, 128
  %1031 = vxpose.xlu0.b32.cont [15/16] 0.0, 128
  %1032 = vxpose.xlu0.b32.end [16/16] 0.0, 128
  %v1033 = vpop.trf.xlu0
  %v1034 = vpop.trf.xlu0
  %v1035 = vpop.trf.xlu0
  %v1036 = vpop.trf.xlu0
  %v1037 = vpop.trf.xlu0
  %v1038 = vpop.trf.xlu0
  %v1039 = vpop.trf.xlu0
  %v1040 = vpop.trf.xlu0
  %v1041 = vpop.trf.xlu0
  %v1042 = vpop.trf.xlu0
  %v1043 = vpop.trf.xlu0
  %v1044 = vpop.trf.xlu0
  %v1045 = vpop.trf.xlu0
  %v1046 = vpop.trf.xlu0
  %v1047 = vpop.trf.xlu0
  %v1048 = vpop.trf.xlu0
  %1050 = vset.pattern.permute.xlu0 0
  %1051 = vperm.xlu0 %1050, %v926
  %v1052 = vpop.permute.xlu0 %1051
  %1055 = vset.pattern.permute.xlu0 0
  %1056 = vperm.xlu0 %1055, %v931
  %v1057 = vpop.permute.xlu0 %1056
  %v1059 = vlaneseq
  %v1060 = vshrl.u32 %v1059, 7
  %v1061 = vsub.s32 0, %v1060
  %v1062 = vrot.slane %v1033, %v1061
  %v1063 = vadd.f32 %v1052, %v1062
  %v1064 = vadd.f32 %v1057, %v1062
  %vm1065 = vcmp.gt.f32.partialorder %v1063, 0.0
  %vm1066 = vcmp.gt.f32.partialorder %v1064, 0.0
  %v1067 = vmul.f32 %v1063, 0.2
  %v1068 = vmul.f32 %v1064, 0.2
  %v1069 = vsel %vm1065, %v1063, %v1067
  %v1070 = vsel %vm1066, %v1064, %v1068
  %v1071 = vadd.f32 %v1069, %v34
  %v1072 = vadd.f32 %v1070, %v35
  %v1073 = vsel %vm336, %v1071, -inf
  %1074 = vmax.xlane.f32.xlu0 %v1073
  %v1075 = vpop.xlane.xlu0 %1074
  %v1076 = vsel %vm336, %v1072, -inf
  %1077 = vmax.xlane.f32.xlu0 %v1076
  %v1078 = vpop.xlane.xlu0 %1077
  %v1079 = vsub.f32 %v1071, %v1075
  %v1080 = vsub.f32 %v1072, %v1078
  %v1081 = vmul.f32 %v1079, 1.442695
  %v1082 = vpow.pop %v1081
  %v1083 = vmul.f32 %v1080, 1.442695
  %v1084 = vpow.pop %v1083
  %v1085 = vsel %vm336, %v1082, 0.0
  %1086 = vadd.xlane.f32.xlu0 %v1085
  %v1087 = vpop.xlane.xlu0 %1086
  %v1088 = vsel %vm336, %v1084, 0.0
  %1089 = vadd.xlane.f32.xlu0 %v1088
  %v1090 = vpop.xlane.xlu0 %1089
  %v1091 = vrcp.pop %v1087
  %v1092 = vrcp.pop %v1090
  %v1093 = vmul.f32 %v1082, %v1091
  %v1094 = vmul.f32 %v1084, %v1092
  %v1095 = vpack.c.bf16 %v1094, %v1093
  %v1096 = vpack.c.bf16 %v848, %v843
  %v1098 = vsel %vm336, %v1095, 0
  %1100 = vmatprep.subr.bf16.mxu0 0
  %1101 = vmatpush1.bf16.msra.mxu0 %v1096
  %1102 = vmatprep.subr.bf16.mxu0 0
  %1103 = vmatpush1.bf16.msra.mxu0 0
  %1104 = vmatprep.subr.bf16.mxu0 0
  %1105 = vmatpush1.bf16.msra.mxu0 0
  %1106 = vmatprep.subr.bf16.mxu0 0
  %1107 = vmatpush1.bf16.msra.mxu0 0
  %1108 = vmatprep.subr.bf16.mxu0 0
  %1109 = vmatpush1.bf16.msra.mxu0 0
  %1110 = vmatprep.subr.bf16.mxu0 0
  %1111 = vmatpush1.bf16.msra.mxu0 0
  %1112 = vmatprep.subr.bf16.mxu0 0
  %1113 = vmatpush1.bf16.msra.mxu0 0
  %1114 = vmatprep.subr.bf16.mxu0 0
  %1115 = vmatpush1.bf16.msra.mxu0 0
  %1116 = vmatprep.subr.bf16.mxu0 0
  %1117 = vmatpush1.bf16.msra.mxu0 0
  %1118 = vmatprep.subr.bf16.mxu0 0
  %1119 = vmatpush1.bf16.msra.mxu0 0
  %1120 = vmatprep.subr.bf16.mxu0 0
  %1121 = vmatpush1.bf16.msra.mxu0 0
  %1122 = vmatprep.subr.bf16.mxu0 0
  %1123 = vmatpush1.bf16.msra.mxu0 0
  %1124 = vmatprep.subr.bf16.mxu0 0
  %1125 = vmatpush1.bf16.msra.mxu0 0
  %1126 = vmatprep.subr.bf16.mxu0 0
  %1127 = vmatpush1.bf16.msra.mxu0 0
  %1128 = vmatprep.subr.bf16.mxu0 0
  %1129 = vmatpush1.bf16.msra.mxu0 0
  %1130 = vmatprep.subr.bf16.mxu0 0
  %1131 = vmatpush1.bf16.msra.mxu0 0
  %1132 = vmatprep.mubr.bf16.mxu0 0
  %1133 = vmatmul.mubr.bf16.gmra.mrb[0].mxu0 %v1098
  %v1134 = vpop.f32.mrb[0].mxu0
  %v1135 = vadd.f32 0.0, %v1134
  %v1136 = vpop.f32.mrb[0].mxu0
  %v1137 = vpop.f32.mrb[0].mxu0
  %v1138 = vadd.f32 0.0, %v1137
  %v1139 = vpop.f32.mrb[0].mxu0
  %1140 = vdwg.mxu0
  %vm1141 = vcmp.gt.f32.partialorder %v1135, 0.0
  %vm1142 = vcmp.gt.f32.partialorder %v1138, 0.0
  %v1143 = vmin.f32 %v1135, 0.0
  %v1144 = vmin.f32 %v1138, 0.0
  %v1145 = vmul.f32 %v1143, 1.442695
  %v1146 = vpow.pop %v1145
  %v1147 = vmul.f32 %v1144, 1.442695
  %v1148 = vpow.pop %v1147
  %v1149 = vsub.f32 %v1146, 1.0
  %v1150 = vsub.f32 %v1148, 1.0
  %v1151 = vsel %vm1141, %v1135, %v1149
  %v1152 = vsel %vm1142, %v1138, %v1150
  %vm1153 = vcmask 64512
  %v1154 = vsel %vm1153, %v1151, -inf
  %1155 = vmax.xlane.f32.xlu0 %v1154
  %v1156 = vpop.xlane.xlu0 %1155
  %v1157 = vsel %vm1153, %v1152, -inf
  %1158 = vmax.xlane.f32.xlu0 %v1157
  %v1159 = vpop.xlane.xlu0 %1158
  %v1160 = vsub.f32 %v1151, %v1156
  %v1161 = vsub.f32 %v1152, %v1159
  %v1162 = vmul.f32 %v1160, 1.442695
  %v1163 = vpow.pop %v1162
  %v1164 = vmul.f32 %v1161, 1.442695
  %v1165 = vpow.pop %v1164
  %v1166 = vsel %vm1153, %v1163, 0.0
  %1167 = vadd.xlane.f32.xlu0 %v1166
  %v1168 = vpop.xlane.xlu0 %1167
  %v1169 = vsel %vm1153, %v1165, 0.0
  %1170 = vadd.xlane.f32.xlu0 %v1169
  %v1171 = vpop.xlane.xlu0 %1170
  %v1172 = vlog2.pop %v1168
  %v1173 = vmul.f32 %v1172, 0.6931472
  %v1174 = vlog2.pop %v1171
  %v1175 = vmul.f32 %v1174, 0.6931472
  %v1176 = vadd.f32 %v1173, %v1156
  %v1177 = vadd.f32 %v1175, %v1159
  %v1178 = vsub.f32 %v1151, %v1176
  %v1179 = vsub.f32 %v1152, %v1177
  %1180 = vst.msk [vmem:[%s8] sm:$0xff] %vm1153, %v1178
  %1181 = vst.msk [vmem:[%s8 + $0x8] sm:$0xff] %vm1153, %v1179
  // Predicated region
  $region34: #{tpu_custom_call.1} parent=0 // pred_check
    _
  $region35: #{tpu_custom_call.1} parent=0 // pred_check_branch
    %1183 = sbr.rel (0) target = $region37
  $region36: #{tpu_custom_call.1} parent=0 // pred_region
    _
  $region37: #{tpu_custom_call.1} parent=0 // pred_fallthru
    _
  // Predicated region
  $region38: #{tpu_custom_call.1} parent=0 // pred_check
    _
  $region39: #{tpu_custom_call.1} parent=0 // pred_check_branch
    %1185 = sbr.rel (0) target = $region41
  $region40: #{tpu_custom_call.1} parent=0 // pred_region
    _
  $region41: #{tpu_custom_call.1} parent=0 // pred_fallthru
    _

</llo_original>
